<compile_context>
chip_gen: v5e
topology: v5e:2x2
jax: 0.10.0
libtpu: 0.0.40
codegen_flags: <defaults>
</compile_context>

<pallas_src>
import jax
import jax.numpy as jnp
from jax.experimental import pallas as pl
from jax.experimental.pallas import tpu as pltpu


# ----------------------------------------------------------------------------
# Fused kernel.  All refs have batch (TILE_B) as the last (lane) dim.
#   u_emb/i_emb : (T, E, TILE_B)
#   per-user/item bias & coeff : (T, TILE_B)
#   global bias & coeff : (T, 1)
#   w_u/w_i : (R_pad, E),  b : (R_pad, 1)
# Outputs:
#   rating : (1, TILE_B)
#   logits : (R_pad, TILE_B)
# ----------------------------------------------------------------------------
def _fused_kernel(u_emb_ref, i_emb_ref,
                  u_pb_ref, i_pb_ref, g_pb_ref,
                  u_nb_ref, i_nb_ref, g_nb_ref,
                  u_c_ref, i_c_ref, g_c_ref,
                  w_u_ref, w_i_ref, b_ref,
                  rating_ref, logits_ref):
    u_emb = u_emb_ref[...]                         # (T, E, TB)
    i_emb = i_emb_ref[...]                         # (T, E, TB)

    # ---- predict_rating path -------------------------------------------
    # <u_emb, i_emb> over the embedding dim: sublane reduction.
    dot = jnp.sum(u_emb * i_emb, axis=1)           # (T, TB)

    pos = jax.nn.sigmoid(dot + u_pb_ref[...] + i_pb_ref[...] + g_pb_ref[...])
    neg = jax.nn.sigmoid(dot + u_nb_ref[...] + i_nb_ref[...] + g_nb_ref[...])
    uif_score = (pos + neg) * 0.5                  # (T, TB)

    uif_coeff = u_c_ref[...] + i_c_ref[...] + g_c_ref[...]   # (T, TB)

    # Sum over tags -> lane-dense (1, TB) output (unmasked store).
    rating_ref[...] = jnp.sum(uif_score * uif_coeff, axis=0, keepdims=True)

    # ---- predict_discretized_rating path --------------------------------
    u_sum = jnp.sum(u_emb, axis=0)                 # (E, TB)  slab-add over T
    i_sum = jnp.sum(i_emb, axis=0)                 # (E, TB)

    # Two MXU dots instead of a lane-axis concat.
    logits = (jnp.dot(w_u_ref[...], u_sum, preferred_element_type=jnp.float32)
              + jnp.dot(w_i_ref[...], i_sum, preferred_element_type=jnp.float32)
              + b_ref[...])                        # (R_pad, TB)
    logits_ref[...] = logits


# ----------------------------------------------------------------------------
# Wrapper: gather rows, lay everything out batch-in-lanes, tile over batch.
# ----------------------------------------------------------------------------
def two_tag_sulm_predict(params, user, item, *, tile_b=128):
    """Returns (rating (B,), discretized_rating (B, R))."""
    B = user.shape[0]
    B_pad = max(tile_b, pl.cdiv(B, tile_b) * tile_b)
    pad = B_pad - B
    user_p = jnp.pad(user, (0, pad))               # pad with index 0 (valid)
    item_p = jnp.pad(item, (0, pad))

    T = params["global_pos_bias"].shape[1]
    E = params["user_tag_embeddings"].shape[2]
    R = params["classifier_w"].shape[0]
    R_pad = 128

    # Gather + batch-to-lanes layout (XLA-side; fused with the gather).
    u_emb = jnp.transpose(params["user_tag_embeddings"][user_p], (1, 2, 0))
    i_emb = jnp.transpose(params["item_tag_embeddings"][item_p], (1, 2, 0))
    u_pb = params["user_pos_bias"][user_p].T       # (T, B_pad)
    i_pb = params["item_pos_bias"][item_p].T
    u_nb = params["user_neg_bias"][user_p].T
    i_nb = params["item_neg_bias"][item_p].T
    u_c = params["user_coeff"][user_p].T
    i_c = params["item_coeff"][item_p].T
    g_pb = params["global_pos_bias"].T             # (T, 1)
    g_nb = params["global_neg_bias"].T
    g_c = params["global_coeff"].T

    # Split + lane-pad the classifier.
    w = params["classifier_w"]                     # (R, 2E)
    w_u = jnp.zeros((R_pad, E), jnp.float32).at[:R].set(w[:, :E])
    w_i = jnp.zeros((R_pad, E), jnp.float32).at[:R].set(w[:, E:])
    b = jnp.zeros((R_pad, 1), jnp.float32).at[:R, 0].set(params["classifier_b"])

    grid = (B_pad // tile_b,)

    emb_spec = pl.BlockSpec((T, E, tile_b), lambda bb: (0, 0, bb))
    bt_spec = pl.BlockSpec((T, tile_b), lambda bb: (0, bb))
    g_spec = pl.BlockSpec((T, 1), lambda bb: (0, 0))
    w_spec = pl.BlockSpec((R_pad, E), lambda bb: (0, 0))
    b_spec = pl.BlockSpec((R_pad, 1), lambda bb: (0, 0))

    rating_out, logits_out = pl.pallas_call(
        _fused_kernel,
        out_shape=(jax.ShapeDtypeStruct((1, B_pad), jnp.float32),
                   jax.ShapeDtypeStruct((R_pad, B_pad), jnp.float32)),
        grid=grid,
        in_specs=[emb_spec, emb_spec,
                  bt_spec, bt_spec, g_spec,
                  bt_spec, bt_spec, g_spec,
                  bt_spec, bt_spec, g_spec,
                  w_spec, w_spec, b_spec],
        out_specs=(pl.BlockSpec((1, tile_b), lambda bb: (0, bb)),
                   pl.BlockSpec((R_pad, tile_b), lambda bb: (0, bb))),
        compiler_params=pltpu.CompilerParams(
            dimension_semantics=("parallel",),
            vmem_limit_bytes=32 * 1024 * 1024),
    )(u_emb, i_emb,
      u_pb, i_pb, g_pb,
      u_nb, i_nb, g_nb,
      u_c, i_c, g_c,
      w_u, w_i, b)

    rating = rating_out[0, :B]                     # (B,)
    disc = logits_out[:R, :B].T                    # (B, R)
    return rating, disc


def predict_rating_pallas(params, user, item):
    return two_tag_sulm_predict(params, user, item)[0]


def predict_discretized_rating_pallas(params, user, item):
    return two_tag_sulm_predict(params, user, item)[1]


# ----------------------------------------------------------------------------
# Parameter construction (deterministic, mirrors _init_weights)
# ----------------------------------------------------------------------------
def init_params(key, config):
    U, I, T, E, R = (config["user_num"], config["item_num"], config["tag_num"],
                     config["embedding_size"], config["rating_num"])
    ks = jax.random.split(key, 13)
    n = lambda k, s, mean=0.0: mean + 0.01 * jax.random.normal(k, s, jnp.float32)
    lim = 1.0 / jnp.sqrt(2.0 * E)
    return {
        "user_tag_embeddings": n(ks[0], (U, T, E)),
        "item_tag_embeddings": n(ks[1], (I, T, E)),
        "user_pos_bias": n(ks[2], (U, T)),
        "item_pos_bias": n(ks[3], (I, T)),
        "global_pos_bias": n(ks[4], (1, T)),
        "user_neg_bias": n(ks[5], (U, T)),
        "item_neg_bias": n(ks[6], (I, T)),
        "global_neg_bias": n(ks[7], (1, T)),
        "user_coeff": n(ks[8], (U, T)),
        "item_coeff": n(ks[9], (I, T)),
        "global_coeff": n(ks[10], (1, T), mean=1.0 / T),
        # nn.Linear(2E, R): weight (R, 2E), bias (R)
        "classifier_w": jax.random.uniform(ks[11], (R, 2 * E), jnp.float32,
                                           -lim, lim),
        "classifier_b": jax.random.uniform(ks[12], (R,), jnp.float32,
                                           -lim, lim),
    }


# ----------------------------------------------------------------------------
# Pure-JAX references for verification
# ----------------------------------------------------------------------------
def _ref_tag_score(params, user, item, tag_type):
    u_emb = params["user_tag_embeddings"][user]
    i_emb = params["item_tag_embeddings"][item]
    if tag_type == 0:
        ub, ib, gb = (params["user_pos_bias"], params["item_pos_bias"],
                      params["global_pos_bias"])
    else:
        ub, ib, gb = (params["user_neg_bias"], params["item_neg_bias"],
                      params["global_neg_bias"])
    s = jnp.sum(u_emb * i_emb, axis=2) + ub[user] + ib[item] + gb
    return jax.nn.sigmoid(s)


def ref_predict_rating(params, user, item):
    score = (_ref_tag_score(params, user, item, 0)
             + _ref_tag_score(params, user, item, 1)) / 2.0
    coeff = (params["user_coeff"][user] + params["item_coeff"][item]
             + params["global_coeff"])
    return jnp.sum(score * coeff, axis=1)


def ref_predict_discretized_rating(params, user, item):
    u = jnp.sum(params["user_tag_embeddings"][user], axis=1)
    i = jnp.sum(params["item_tag_embeddings"][item], axis=1)
    ui = jnp.concatenate((u, i), axis=1)
    return ui @ params["classifier_w"].T + params["classifier_b"]


# ----------------------------------------------------------------------------
if __name__ == "__main__":
    config = {
        "user_num": 8,
        "item_num": 8,
        "tag_num": 16,
        "embedding_size": 32,
        "rating_num": 5,
        "candidate_num": 4,
        "device": None,
    }
    key = jax.random.PRNGKey(0)
    kp, ku, ki = jax.random.split(key, 3)
    params = init_params(kp, config)

    predict = jax.jit(two_tag_sulm_predict)

    # Case 1: small batch (exercises batch padding, single grid step).
    B = 4
    user = jax.random.randint(ku, (B,), 0, config["user_num"])
    item = jax.random.randint(ki, (B,), 0, config["item_num"])
    rating, disc = predict(params, user, item)
    rating = jax.block_until_ready(rating)
    disc = jax.block_until_ready(disc)

    assert rating.shape == (B,)
    assert disc.shape == (B, config["rating_num"])
    assert jnp.allclose(rating, ref_predict_rating(params, user, item),
                        atol=1e-5, rtol=1e-5)
    assert jnp.allclose(disc, ref_predict_discretized_rating(params, user, item),
                        atol=2e-4, rtol=2e-4)

    # Case 2: multi-tile batch (exercises the grid / parallel B tiling).
    B2 = 256
    k2u, k2i = jax.random.split(jax.random.PRNGKey(1))
    user2 = jax.random.randint(k2u, (B2,), 0, config["user_num"])
    item2 = jax.random.randint(k2i, (B2,), 0, config["item_num"])
    rating2, disc2 = predict(params, user2, item2)
    rating2 = jax.block_until_ready(rating2)
    disc2 = jax.block_until_ready(disc2)

    assert rating2.shape == (B2,)
    assert disc2.shape == (B2, config["rating_num"])
    assert jnp.allclose(rating2, ref_predict_rating(params, user2, item2),
                        atol=1e-5, rtol=1e-5)
    assert jnp.allclose(disc2,
                        ref_predict_discretized_rating(params, user2, item2),
                        atol=2e-4, rtol=2e-4)

    print("KERNEL_OK")
</pallas_src>

<mosaic_0001>
module attributes {stable_mosaic.version = 11 : i64} {
  func.func @_fused_kernel(%arg0: i32, %arg1: memref<16x32x128xf32, #tpu.memory_space<vmem>>, %arg2: memref<16x32x128xf32, #tpu.memory_space<vmem>>, %arg3: memref<16x128xf32, #tpu.memory_space<vmem>>, %arg4: memref<16x128xf32, #tpu.memory_space<vmem>>, %arg5: memref<16x1xf32, #tpu.memory_space<vmem>>, %arg6: memref<16x128xf32, #tpu.memory_space<vmem>>, %arg7: memref<16x128xf32, #tpu.memory_space<vmem>>, %arg8: memref<16x1xf32, #tpu.memory_space<vmem>>, %arg9: memref<16x128xf32, #tpu.memory_space<vmem>>, %arg10: memref<16x128xf32, #tpu.memory_space<vmem>>, %arg11: memref<16x1xf32, #tpu.memory_space<vmem>>, %arg12: memref<128x32xf32, #tpu.memory_space<vmem>>, %arg13: memref<128x32xf32, #tpu.memory_space<vmem>>, %arg14: memref<128x1xf32, #tpu.memory_space<vmem>>, %arg15: memref<1x128xf32, #tpu.memory_space<vmem>>, %arg16: memref<128x128xf32, #tpu.memory_space<vmem>>) attributes {dimension_semantics = [#tpu.dimension_semantics<parallel>], iteration_bounds = array<i64: 1>, scalar_prefetch = 0 : i64, scratch_operands = 0 : i64, tpu.core_type = #tpu.core_type<tc>, window_params = [{transform_indices = @transform_0, window_bounds = array<i64: 16, 32, 128>}, {transform_indices = @transform_1, window_bounds = array<i64: 16, 32, 128>}, {transform_indices = @transform_2, window_bounds = array<i64: 16, 128>}, {transform_indices = @transform_3, window_bounds = array<i64: 16, 128>}, {pipeline_mode = #tpu.pipeline_mode<synchronous>, transform_indices = @transform_4, window_bounds = array<i64: 16, 1>}, {transform_indices = @transform_5, window_bounds = array<i64: 16, 128>}, {transform_indices = @transform_6, window_bounds = array<i64: 16, 128>}, {pipeline_mode = #tpu.pipeline_mode<synchronous>, transform_indices = @transform_7, window_bounds = array<i64: 16, 1>}, {transform_indices = @transform_8, window_bounds = array<i64: 16, 128>}, {transform_indices = @transform_9, window_bounds = array<i64: 16, 128>}, {pipeline_mode = #tpu.pipeline_mode<synchronous>, transform_indices = @transform_10, window_bounds = array<i64: 16, 1>}, {pipeline_mode = #tpu.pipeline_mode<synchronous>, transform_indices = @transform_11, window_bounds = array<i64: 128, 32>}, {pipeline_mode = #tpu.pipeline_mode<synchronous>, transform_indices = @transform_12, window_bounds = array<i64: 128, 32>}, {pipeline_mode = #tpu.pipeline_mode<synchronous>, transform_indices = @transform_13, window_bounds = array<i64: 128, 1>}, {transform_indices = @transform_14, window_bounds = array<i64: 1, 128>}, {transform_indices = @transform_15, window_bounds = array<i64: 128, 128>}]} {
    %c0 = arith.constant 0 : index
    %c0_0 = arith.constant 0 : index
    %c0_1 = arith.constant 0 : index
    %0 = vector.load %arg1[%c0, %c0_0, %c0_1] : memref<16x32x128xf32, #tpu.memory_space<vmem>>, vector<16x32x128xf32>
    %c0_2 = arith.constant 0 : index
    %c0_3 = arith.constant 0 : index
    %c0_4 = arith.constant 0 : index
    %1 = vector.load %arg2[%c0_2, %c0_3, %c0_4] : memref<16x32x128xf32, #tpu.memory_space<vmem>>, vector<16x32x128xf32>
    %2 = arith.mulf %0, %1 : vector<16x32x128xf32>
    %cst = arith.constant dense<0.000000e+00> : vector<16x128xf32>
    %3 = vector.multi_reduction <add>, %2, %cst [1] : vector<16x32x128xf32> to vector<16x128xf32>
    %c0_5 = arith.constant 0 : index
    %c0_6 = arith.constant 0 : index
    %4 = vector.load %arg3[%c0_5, %c0_6] : memref<16x128xf32, #tpu.memory_space<vmem>>, vector<16x128xf32>
    %5 = arith.addf %3, %4 : vector<16x128xf32>
    %c0_7 = arith.constant 0 : index
    %c0_8 = arith.constant 0 : index
    %6 = vector.load %arg4[%c0_7, %c0_8] : memref<16x128xf32, #tpu.memory_space<vmem>>, vector<16x128xf32>
    %7 = arith.addf %5, %6 : vector<16x128xf32>
    %c0_9 = arith.constant 0 : index
    %c0_10 = arith.constant 0 : index
    %8 = vector.load %arg5[%c0_9, %c0_10] : memref<16x1xf32, #tpu.memory_space<vmem>>, vector<16x1xf32>
    %9 = vector.broadcast %8 : vector<16x1xf32> to vector<16x128xf32>
    %10 = arith.addf %7, %9 : vector<16x128xf32>
    %11 = arith.negf %10 : vector<16x128xf32>
    %12 = math.exp %11 : vector<16x128xf32>
    %cst_11 = arith.constant 1.000000e+00 : f32
    %13 = vector.broadcast %cst_11 : f32 to vector<16x128xf32>
    %14 = arith.addf %13, %12 : vector<16x128xf32>
    %15 = arith.divf %13, %14 : vector<16x128xf32>
    %c0_12 = arith.constant 0 : index
    %c0_13 = arith.constant 0 : index
    %16 = vector.load %arg6[%c0_12, %c0_13] : memref<16x128xf32, #tpu.memory_space<vmem>>, vector<16x128xf32>
    %17 = arith.addf %3, %16 : vector<16x128xf32>
    %c0_14 = arith.constant 0 : index
    %c0_15 = arith.constant 0 : index
    %18 = vector.load %arg7[%c0_14, %c0_15] : memref<16x128xf32, #tpu.memory_space<vmem>>, vector<16x128xf32>
    %19 = arith.addf %17, %18 : vector<16x128xf32>
    %c0_16 = arith.constant 0 : index
    %c0_17 = arith.constant 0 : index
    %20 = vector.load %arg8[%c0_16, %c0_17] : memref<16x1xf32, #tpu.memory_space<vmem>>, vector<16x1xf32>
    %21 = vector.broadcast %20 : vector<16x1xf32> to vector<16x128xf32>
    %22 = arith.addf %19, %21 : vector<16x128xf32>
    %23 = arith.negf %22 : vector<16x128xf32>
    %24 = math.exp %23 : vector<16x128xf32>
    %cst_18 = arith.constant 1.000000e+00 : f32
    %25 = vector.broadcast %cst_18 : f32 to vector<16x128xf32>
    %26 = arith.addf %25, %24 : vector<16x128xf32>
    %27 = arith.divf %25, %26 : vector<16x128xf32>
    %28 = arith.addf %15, %27 : vector<16x128xf32>
    %cst_19 = arith.constant 5.000000e-01 : f32
    %29 = vector.broadcast %cst_19 : f32 to vector<16x128xf32>
    %30 = arith.mulf %28, %29 : vector<16x128xf32>
    %c0_20 = arith.constant 0 : index
    %c0_21 = arith.constant 0 : index
    %31 = vector.load %arg9[%c0_20, %c0_21] : memref<16x128xf32, #tpu.memory_space<vmem>>, vector<16x128xf32>
    %c0_22 = arith.constant 0 : index
    %c0_23 = arith.constant 0 : index
    %32 = vector.load %arg10[%c0_22, %c0_23] : memref<16x128xf32, #tpu.memory_space<vmem>>, vector<16x128xf32>
    %33 = arith.addf %31, %32 : vector<16x128xf32>
    %c0_24 = arith.constant 0 : index
    %c0_25 = arith.constant 0 : index
    %34 = vector.load %arg11[%c0_24, %c0_25] : memref<16x1xf32, #tpu.memory_space<vmem>>, vector<16x1xf32>
    %35 = vector.broadcast %34 : vector<16x1xf32> to vector<16x128xf32>
    %36 = arith.addf %33, %35 : vector<16x128xf32>
    %37 = arith.mulf %30, %36 : vector<16x128xf32>
    %cst_26 = arith.constant dense<0.000000e+00> : vector<128xf32>
    %38 = vector.multi_reduction <add>, %37, %cst_26 [0] : vector<16x128xf32> to vector<128xf32>
    %39 = vector.shape_cast %38 : vector<128xf32> to vector<1x128xf32>
    %c0_27 = arith.constant 0 : index
    %c0_28 = arith.constant 0 : index
    %40 = vector.load %arg15[%c0_27, %c0_28] : memref<1x128xf32, #tpu.memory_space<vmem>>, vector<1x128xf32>
    tpu.vector_store %arg15[%c0_27, %c0_28], %39 {strides = array<i32>} : memref<1x128xf32, #tpu.memory_space<vmem>>, vector<1x128xf32>,
    %cst_29 = arith.constant dense<0.000000e+00> : vector<32x128xf32>
    %41 = vector.multi_reduction <add>, %0, %cst_29 [0] : vector<16x32x128xf32> to vector<32x128xf32>
    %cst_30 = arith.constant dense<0.000000e+00> : vector<32x128xf32>
    %42 = vector.multi_reduction <add>, %1, %cst_30 [0] : vector<16x32x128xf32> to vector<32x128xf32>
    %c0_31 = arith.constant 0 : index
    %c0_32 = arith.constant 0 : index
    %43 = vector.load %arg12[%c0_31, %c0_32] : memref<128x32xf32, #tpu.memory_space<vmem>>, vector<128x32xf32>
    %cst_33 = arith.constant dense<0.000000e+00> : vector<128x128xf32>
    %44 = tpu.matmul %43, %41, %cst_33 {dimension_numbers = #tpu.dot_dimension_numbers<[1], [0], [0], [1], [0, 0, 1, 1], [], []>} : vector<128x32xf32>, vector<32x128xf32>, vector<128x128xf32> -> vector<128x128xf32>
    %c0_34 = arith.constant 0 : index
    %c0_35 = arith.constant 0 : index
    %45 = vector.load %arg13[%c0_34, %c0_35] : memref<128x32xf32, #tpu.memory_space<vmem>>, vector<128x32xf32>
    %cst_36 = arith.constant dense<0.000000e+00> : vector<128x128xf32>
    %46 = tpu.matmul %45, %42, %cst_36 {dimension_numbers = #tpu.dot_dimension_numbers<[1], [0], [0], [1], [0, 0, 1, 1], [], []>} : vector<128x32xf32>, vector<32x128xf32>, vector<128x128xf32> -> vector<128x128xf32>
    %47 = arith.addf %44, %46 : vector<128x128xf32>
    %c0_37 = arith.constant 0 : index
    %c0_38 = arith.constant 0 : index
    %48 = vector.load %arg14[%c0_37, %c0_38] : memref<128x1xf32, #tpu.memory_space<vmem>>, vector<128x1xf32>
    %49 = vector.broadcast %48 : vector<128x1xf32> to vector<128x128xf32>
    %50 = arith.addf %47, %49 : vector<128x128xf32>
    %c0_39 = arith.constant 0 : index
    %c0_40 = arith.constant 0 : index
    %51 = vector.load %arg16[%c0_39, %c0_40] : memref<128x128xf32, #tpu.memory_space<vmem>>, vector<128x128xf32>
    tpu.vector_store %arg16[%c0_39, %c0_40], %50 {strides = array<i32>} : memref<128x128xf32, #tpu.memory_space<vmem>>, vector<128x128xf32>,
    return
  }
  func.func @transform_0(%arg0: i32) -> (i32, i32, i32) {
    %c0_i32 = arith.constant 0 : i32
    %c0_i32_0 = arith.constant 0 : i32
    %c0_i32_1 = arith.constant 0 : i32
    return %c0_i32, %c0_i32_0, %arg0 : i32, i32, i32
  }
  func.func @transform_1(%arg0: i32) -> (i32, i32, i32) {
    %c0_i32 = arith.constant 0 : i32
    %c0_i32_0 = arith.constant 0 : i32
    %c0_i32_1 = arith.constant 0 : i32
    return %c0_i32, %c0_i32_0, %arg0 : i32, i32, i32
  }
  func.func @transform_2(%arg0: i32) -> (i32, i32) {
    %c0_i32 = arith.constant 0 : i32
    %c0_i32_0 = arith.constant 0 : i32
    return %c0_i32, %arg0 : i32, i32
  }
  func.func @transform_3(%arg0: i32) -> (i32, i32) {
    %c0_i32 = arith.constant 0 : i32
    %c0_i32_0 = arith.constant 0 : i32
    return %c0_i32, %arg0 : i32, i32
  }
  func.func @transform_4(%arg0: i32) -> (i32, i32) {
    %c0_i32 = arith.constant 0 : i32
    %c0_i32_0 = arith.constant 0 : i32
    %c0_i32_1 = arith.constant 0 : i32
    return %c0_i32, %c0_i32_0 : i32, i32
  }
  func.func @transform_5(%arg0: i32) -> (i32, i32) {
    %c0_i32 = arith.constant 0 : i32
    %c0_i32_0 = arith.constant 0 : i32
    return %c0_i32, %arg0 : i32, i32
  }
  func.func @transform_6(%arg0: i32) -> (i32, i32) {
    %c0_i32 = arith.constant 0 : i32
    %c0_i32_0 = arith.constant 0 : i32
    return %c0_i32, %arg0 : i32, i32
  }
  func.func @transform_7(%arg0: i32) -> (i32, i32) {
    %c0_i32 = arith.constant 0 : i32
    %c0_i32_0 = arith.constant 0 : i32
    %c0_i32_1 = arith.constant 0 : i32
    return %c0_i32, %c0_i32_0 : i32, i32
  }
  func.func @transform_8(%arg0: i32) -> (i32, i32) {
    %c0_i32 = arith.constant 0 : i32
    %c0_i32_0 = arith.constant 0 : i32
    return %c0_i32, %arg0 : i32, i32
  }
  func.func @transform_9(%arg0: i32) -> (i32, i32) {
    %c0_i32 = arith.constant 0 : i32
    %c0_i32_0 = arith.constant 0 : i32
    return %c0_i32, %arg0 : i32, i32
  }
  func.func @transform_10(%arg0: i32) -> (i32, i32) {
    %c0_i32 = arith.constant 0 : i32
    %c0_i32_0 = arith.constant 0 : i32
    %c0_i32_1 = arith.constant 0 : i32
    return %c0_i32, %c0_i32_0 : i32, i32
  }
  func.func @transform_11(%arg0: i32) -> (i32, i32) {
    %c0_i32 = arith.constant 0 : i32
    %c0_i32_0 = arith.constant 0 : i32
    %c0_i32_1 = arith.constant 0 : i32
    return %c0_i32, %c0_i32_0 : i32, i32
  }
  func.func @transform_12(%arg0: i32) -> (i32, i32) {
    %c0_i32 = arith.constant 0 : i32
    %c0_i32_0 = arith.constant 0 : i32
    %c0_i32_1 = arith.constant 0 : i32
    return %c0_i32, %c0_i32_0 : i32, i32
  }
  func.func @transform_13(%arg0: i32) -> (i32, i32) {
    %c0_i32 = arith.constant 0 : i32
    %c0_i32_0 = arith.constant 0 : i32
    %c0_i32_1 = arith.constant 0 : i32
    return %c0_i32, %c0_i32_0 : i32, i32
  }
  func.func @transform_14(%arg0: i32) -> (i32, i32) {
    %c0_i32 = arith.constant 0 : i32
    %c0_i32_0 = arith.constant 0 : i32
    return %c0_i32, %arg0 : i32, i32
  }
  func.func @transform_15(%arg0: i32) -> (i32, i32) {
    %c0_i32 = arith.constant 0 : i32
    %c0_i32_0 = arith.constant 0 : i32
    return %c0_i32, %arg0 : i32, i32
  }
}

</mosaic_0001>

<llo_original>
// kernel: two_tag_sulm_predict.1
$region0: #{two_tag_sulm_predict.1}
  #allocation0 [shape = 'u32[]', space=smem, size = 0x4, offset = 0x4, fixed_abs, tag = 'smem constant byte address 0x4 - core index']
  #allocation1 [shape = 'u32[72,128]{1,0:T(1,128)}', space=vmem, size = 0x9000, scoped, tag = 'internal scratch']
  %s0 = inlined_call_operand.vmem [shape: f32[16,32,128], index: 0, kind: input, shape index: {}]
  %s1 = inlined_call_operand.vmem [shape: f32[16,32,128], index: 1, kind: input, shape index: {}]
  %s2 = inlined_call_operand.vmem [shape: f32[16,128], index: 2, kind: input, shape index: {}]
  %s3 = inlined_call_operand.vmem [shape: f32[16,128], index: 3, kind: input, shape index: {}]
  %s4 = inlined_call_operand.vmem [shape: f32[16,1], index: 4, kind: input, shape index: {}]
  %s5 = inlined_call_operand.vmem [shape: f32[16,128], index: 5, kind: input, shape index: {}]
  %s6 = inlined_call_operand.vmem [shape: f32[16,128], index: 6, kind: input, shape index: {}]
  %s7 = inlined_call_operand.vmem [shape: f32[16,1], index: 7, kind: input, shape index: {}]
  %s8 = inlined_call_operand.vmem [shape: f32[16,128], index: 8, kind: input, shape index: {}]
  %s9 = inlined_call_operand.vmem [shape: f32[16,128], index: 9, kind: input, shape index: {}]
  %s10 = inlined_call_operand.vmem [shape: f32[16,1], index: 10, kind: input, shape index: {}]
  %s11 = inlined_call_operand.vmem [shape: f32[128,32], index: 11, kind: input, shape index: {}]
  %s12 = inlined_call_operand.vmem [shape: f32[128,32], index: 12, kind: input, shape index: {}]
  %s13 = inlined_call_operand.vmem [shape: f32[128,1], index: 13, kind: input, shape index: {}]
  %s14 = inlined_call_operand.vmem [shape: f32[1,128], index: 14, kind: output, shape index: {0}]
  %s15 = inlined_call_operand.vmem [shape: f32[128,128], index: 15, kind: output, shape index: {1}]
  %16 = xla_tuple %s14, %s15
  %s17 = sld [smem:[#allocation0]]
  $region74: #{two_tag_sulm_predict.1} parent=0
    _
  %s19 = ssub.s32 1, %s17
  %s20 = scalar_select 0, %s19, %s17
  // Predicated region
  $region2: #{two_tag_sulm_predict.1} parent=0 // pred_check
    _
  $region3: #{two_tag_sulm_predict.1} parent=0 // pred_check_branch
    %22 = sbr.rel (0) target = $region5
  $region4: #{two_tag_sulm_predict.1} parent=0 // pred_region
    _
  $region5: #{two_tag_sulm_predict.1} parent=0 // pred_fallthru
    _
  // Predicated region
  $region6: #{two_tag_sulm_predict.1} parent=0 // pred_check
    _
  $region7: #{two_tag_sulm_predict.1} parent=0 // pred_check_branch
    %24 = sbr.rel (0) target = $region9
  $region8: #{two_tag_sulm_predict.1} parent=0 // pred_region
    _
  $region9: #{two_tag_sulm_predict.1} parent=0 // pred_fallthru
    _
  // Predicated region
  $region10: #{two_tag_sulm_predict.1} parent=0 // pred_check
    _
  $region11: #{two_tag_sulm_predict.1} parent=0 // pred_check_branch
    %26 = sbr.rel (0) target = $region13
  $region12: #{two_tag_sulm_predict.1} parent=0 // pred_region
    _
  $region13: #{two_tag_sulm_predict.1} parent=0 // pred_fallthru
    _
  // Predicated region
  $region14: #{two_tag_sulm_predict.1} parent=0 // pred_check
    _
  $region15: #{two_tag_sulm_predict.1} parent=0 // pred_check_branch
    %28 = sbr.rel (0) target = $region17
  $region16: #{two_tag_sulm_predict.1} parent=0 // pred_region
    _
  $region17: #{two_tag_sulm_predict.1} parent=0 // pred_fallthru
    _
  // Predicated region
  $region18: #{two_tag_sulm_predict.1} parent=0 // pred_check
    _
  $region19: #{two_tag_sulm_predict.1} parent=0 // pred_check_branch
    %30 = sbr.rel (0) target = $region21
  $region20: #{two_tag_sulm_predict.1} parent=0 // pred_region
    _
  $region21: #{two_tag_sulm_predict.1} parent=0 // pred_fallthru
    _
  // Predicated region
  $region22: #{two_tag_sulm_predict.1} parent=0 // pred_check
    _
  $region23: #{two_tag_sulm_predict.1} parent=0 // pred_check_branch
    %32 = sbr.rel (0) target = $region25
  $region24: #{two_tag_sulm_predict.1} parent=0 // pred_region
    _
  $region25: #{two_tag_sulm_predict.1} parent=0 // pred_fallthru
    _
  // Predicated region
  $region26: #{two_tag_sulm_predict.1} parent=0 // pred_check
    _
  $region27: #{two_tag_sulm_predict.1} parent=0 // pred_check_branch
    %34 = sbr.rel (0) target = $region29
  $region28: #{two_tag_sulm_predict.1} parent=0 // pred_region
    _
  $region29: #{two_tag_sulm_predict.1} parent=0 // pred_fallthru
    _
  // Predicated region
  $region30: #{two_tag_sulm_predict.1} parent=0 // pred_check
    _
  $region31: #{two_tag_sulm_predict.1} parent=0 // pred_check_branch
    %36 = sbr.rel (0) target = $region33
  $region32: #{two_tag_sulm_predict.1} parent=0 // pred_region
    _
  $region33: #{two_tag_sulm_predict.1} parent=0 // pred_fallthru
    _
  // Predicated region
  $region34: #{two_tag_sulm_predict.1} parent=0 // pred_check
    _
  $region35: #{two_tag_sulm_predict.1} parent=0 // pred_check_branch
    %38 = sbr.rel (0) target = $region37
  $region36: #{two_tag_sulm_predict.1} parent=0 // pred_region
    _
  $region37: #{two_tag_sulm_predict.1} parent=0 // pred_fallthru
    _
  // Predicated region
  $region38: #{two_tag_sulm_predict.1} parent=0 // pred_check
    _
  $region39: #{two_tag_sulm_predict.1} parent=0 // pred_check_branch
    %40 = sbr.rel (0) target = $region41
  $region40: #{two_tag_sulm_predict.1} parent=0 // pred_region
    _
  $region41: #{two_tag_sulm_predict.1} parent=0 // pred_fallthru
    _
  // Predicated region
  $region42: #{two_tag_sulm_predict.1} parent=0 // pred_check
    _
  $region43: #{two_tag_sulm_predict.1} parent=0 // pred_check_branch
    %42 = sbr.rel (0) target = $region45
  $region44: #{two_tag_sulm_predict.1} parent=0 // pred_region
    _
  $region45: #{two_tag_sulm_predict.1} parent=0 // pred_fallthru
    _
  // Predicated region
  $region46: #{two_tag_sulm_predict.1} parent=0 // pred_check
    _
  $region47: #{two_tag_sulm_predict.1} parent=0 // pred_check_branch
    %44 = sbr.rel (0) target = $region49
  $region48: #{two_tag_sulm_predict.1} parent=0 // pred_region
    _
  $region49: #{two_tag_sulm_predict.1} parent=0 // pred_fallthru
    _
  // Predicated region
  $region50: #{two_tag_sulm_predict.1} parent=0 // pred_check
    _
  $region51: #{two_tag_sulm_predict.1} parent=0 // pred_check_branch
    %46 = sbr.rel (0) target = $region53
  $region52: #{two_tag_sulm_predict.1} parent=0 // pred_region
    _
  $region53: #{two_tag_sulm_predict.1} parent=0 // pred_fallthru
    _
  // Predicated region
  $region54: #{two_tag_sulm_predict.1} parent=0 // pred_check
    _
  $region55: #{two_tag_sulm_predict.1} parent=0 // pred_check_branch
    %48 = sbr.rel (0) target = $region57
  $region56: #{two_tag_sulm_predict.1} parent=0 // pred_region
    _
  $region57: #{two_tag_sulm_predict.1} parent=0 // pred_fallthru
    _
  %v49 = vld [vmem:[%s0] sm:$0xff]
  %v50 = vld [vmem:[%s0 + $0x8] sm:$0xff]
  %v51 = vld [vmem:[%s0 + $0x10] sm:$0xff]
  %v52 = vld [vmem:[%s0 + $0x18] sm:$0xff]
  %v53 = vld [vmem:[%s0 + $0x20] sm:$0xff]
  %v54 = vld [vmem:[%s0 + $0x28] sm:$0xff]
  %v55 = vld [vmem:[%s0 + $0x30] sm:$0xff]
  %v56 = vld [vmem:[%s0 + $0x38] sm:$0xff]
  %v57 = vld [vmem:[%s0 + $0x40] sm:$0xff]
  %v58 = vld [vmem:[%s0 + $0x48] sm:$0xff]
  %v59 = vld [vmem:[%s0 + $0x50] sm:$0xff]
  %v60 = vld [vmem:[%s0 + $0x58] sm:$0xff]
  %v61 = vld [vmem:[%s0 + $0x60] sm:$0xff]
  %v62 = vld [vmem:[%s0 + $0x68] sm:$0xff]
  %v63 = vld [vmem:[%s0 + $0x70] sm:$0xff]
  %v64 = vld [vmem:[%s0 + $0x78] sm:$0xff]
  %v65 = vld [vmem:[%s0 + $0x80] sm:$0xff]
  %v66 = vld [vmem:[%s0 + $0x88] sm:$0xff]
  %v67 = vld [vmem:[%s0 + $0x90] sm:$0xff]
  %v68 = vld [vmem:[%s0 + $0x98] sm:$0xff]
  %v69 = vld [vmem:[%s0 + $0xa0] sm:$0xff]
  %v70 = vld [vmem:[%s0 + $0xa8] sm:$0xff]
  %v71 = vld [vmem:[%s0 + $0xb0] sm:$0xff]
  %v72 = vld [vmem:[%s0 + $0xb8] sm:$0xff]
  %v73 = vld [vmem:[%s0 + $0xc0] sm:$0xff]
  %v74 = vld [vmem:[%s0 + $0xc8] sm:$0xff]
  %v75 = vld [vmem:[%s0 + $0xd0] sm:$0xff]
  %v76 = vld [vmem:[%s0 + $0xd8] sm:$0xff]
  %v77 = vld [vmem:[%s0 + $0xe0] sm:$0xff]
  %v78 = vld [vmem:[%s0 + $0xe8] sm:$0xff]
  %v79 = vld [vmem:[%s0 + $0xf0] sm:$0xff]
  %v80 = vld [vmem:[%s0 + $0xf8] sm:$0xff]
  %v81 = vld [vmem:[%s0 + $0x100] sm:$0xff]
  %v82 = vld [vmem:[%s0 + $0x108] sm:$0xff]
  %v83 = vld [vmem:[%s0 + $0x110] sm:$0xff]
  %v84 = vld [vmem:[%s0 + $0x118] sm:$0xff]
  %v85 = vld [vmem:[%s0 + $0x120] sm:$0xff]
  %v86 = vld [vmem:[%s0 + $0x128] sm:$0xff]
  %v87 = vld [vmem:[%s0 + $0x130] sm:$0xff]
  %v88 = vld [vmem:[%s0 + $0x138] sm:$0xff]
  %v89 = vld [vmem:[%s0 + $0x140] sm:$0xff]
  %v90 = vld [vmem:[%s0 + $0x148] sm:$0xff]
  %v91 = vld [vmem:[%s0 + $0x150] sm:$0xff]
  %v92 = vld [vmem:[%s0 + $0x158] sm:$0xff]
  %v93 = vld [vmem:[%s0 + $0x160] sm:$0xff]
  %v94 = vld [vmem:[%s0 + $0x168] sm:$0xff]
  %v95 = vld [vmem:[%s0 + $0x170] sm:$0xff]
  %v96 = vld [vmem:[%s0 + $0x178] sm:$0xff]
  %v97 = vld [vmem:[%s0 + $0x180] sm:$0xff]
  %v98 = vld [vmem:[%s0 + $0x188] sm:$0xff]
  %v99 = vld [vmem:[%s0 + $0x190] sm:$0xff]
  %v100 = vld [vmem:[%s0 + $0x198] sm:$0xff]
  %v101 = vld [vmem:[%s0 + $0x1a0] sm:$0xff]
  %v102 = vld [vmem:[%s0 + $0x1a8] sm:$0xff]
  %v103 = vld [vmem:[%s0 + $0x1b0] sm:$0xff]
  %v104 = vld [vmem:[%s0 + $0x1b8] sm:$0xff]
  %v105 = vld [vmem:[%s0 + $0x1c0] sm:$0xff]
  %v106 = vld [vmem:[%s0 + $0x1c8] sm:$0xff]
  %v107 = vld [vmem:[%s0 + $0x1d0] sm:$0xff]
  %v108 = vld [vmem:[%s0 + $0x1d8] sm:$0xff]
  %v109 = vld [vmem:[%s0 + $0x1e0] sm:$0xff]
  %v110 = vld [vmem:[%s0 + $0x1e8] sm:$0xff]
  %v111 = vld [vmem:[%s0 + $0x1f0] sm:$0xff]
  %v112 = vld [vmem:[%s0 + $0x1f8] sm:$0xff]
  %v113 = vld [vmem:[%s1] sm:$0xff]
  %v114 = vld [vmem:[%s1 + $0x8] sm:$0xff]
  %v115 = vld [vmem:[%s1 + $0x10] sm:$0xff]
  %v116 = vld [vmem:[%s1 + $0x18] sm:$0xff]
  %v117 = vld [vmem:[%s1 + $0x20] sm:$0xff]
  %v118 = vld [vmem:[%s1 + $0x28] sm:$0xff]
  %v119 = vld [vmem:[%s1 + $0x30] sm:$0xff]
  %v120 = vld [vmem:[%s1 + $0x38] sm:$0xff]
  %v121 = vld [vmem:[%s1 + $0x40] sm:$0xff]
  %v122 = vld [vmem:[%s1 + $0x48] sm:$0xff]
  %v123 = vld [vmem:[%s1 + $0x50] sm:$0xff]
  %v124 = vld [vmem:[%s1 + $0x58] sm:$0xff]
  %v125 = vld [vmem:[%s1 + $0x60] sm:$0xff]
  %v126 = vld [vmem:[%s1 + $0x68] sm:$0xff]
  %v127 = vld [vmem:[%s1 + $0x70] sm:$0xff]
  %v128 = vld [vmem:[%s1 + $0x78] sm:$0xff]
  %v129 = vld [vmem:[%s1 + $0x80] sm:$0xff]
  %v130 = vld [vmem:[%s1 + $0x88] sm:$0xff]
  %v131 = vld [vmem:[%s1 + $0x90] sm:$0xff]
  %v132 = vld [vmem:[%s1 + $0x98] sm:$0xff]
  %v133 = vld [vmem:[%s1 + $0xa0] sm:$0xff]
  %v134 = vld [vmem:[%s1 + $0xa8] sm:$0xff]
  %v135 = vld [vmem:[%s1 + $0xb0] sm:$0xff]
  %v136 = vld [vmem:[%s1 + $0xb8] sm:$0xff]
  %v137 = vld [vmem:[%s1 + $0xc0] sm:$0xff]
  %v138 = vld [vmem:[%s1 + $0xc8] sm:$0xff]
  %v139 = vld [vmem:[%s1 + $0xd0] sm:$0xff]
  %v140 = vld [vmem:[%s1 + $0xd8] sm:$0xff]
  %v141 = vld [vmem:[%s1 + $0xe0] sm:$0xff]
  %v142 = vld [vmem:[%s1 + $0xe8] sm:$0xff]
  %v143 = vld [vmem:[%s1 + $0xf0] sm:$0xff]
  %v144 = vld [vmem:[%s1 + $0xf8] sm:$0xff]
  %v145 = vld [vmem:[%s1 + $0x100] sm:$0xff]
  %v146 = vld [vmem:[%s1 + $0x108] sm:$0xff]
  %v147 = vld [vmem:[%s1 + $0x110] sm:$0xff]
  %v148 = vld [vmem:[%s1 + $0x118] sm:$0xff]
  %v149 = vld [vmem:[%s1 + $0x120] sm:$0xff]
  %v150 = vld [vmem:[%s1 + $0x128] sm:$0xff]
  %v151 = vld [vmem:[%s1 + $0x130] sm:$0xff]
  %v152 = vld [vmem:[%s1 + $0x138] sm:$0xff]
  %v153 = vld [vmem:[%s1 + $0x140] sm:$0xff]
  %v154 = vld [vmem:[%s1 + $0x148] sm:$0xff]
  %v155 = vld [vmem:[%s1 + $0x150] sm:$0xff]
  %v156 = vld [vmem:[%s1 + $0x158] sm:$0xff]
  %v157 = vld [vmem:[%s1 + $0x160] sm:$0xff]
  %v158 = vld [vmem:[%s1 + $0x168] sm:$0xff]
  %v159 = vld [vmem:[%s1 + $0x170] sm:$0xff]
  %v160 = vld [vmem:[%s1 + $0x178] sm:$0xff]
  %v161 = vld [vmem:[%s1 + $0x180] sm:$0xff]
  %v162 = vld [vmem:[%s1 + $0x188] sm:$0xff]
  %v163 = vld [vmem:[%s1 + $0x190] sm:$0xff]
  %v164 = vld [vmem:[%s1 + $0x198] sm:$0xff]
  %v165 = vld [vmem:[%s1 + $0x1a0] sm:$0xff]
  %v166 = vld [vmem:[%s1 + $0x1a8] sm:$0xff]
  %v167 = vld [vmem:[%s1 + $0x1b0] sm:$0xff]
  %v168 = vld [vmem:[%s1 + $0x1b8] sm:$0xff]
  %v169 = vld [vmem:[%s1 + $0x1c0] sm:$0xff]
  %v170 = vld [vmem:[%s1 + $0x1c8] sm:$0xff]
  %v171 = vld [vmem:[%s1 + $0x1d0] sm:$0xff]
  %v172 = vld [vmem:[%s1 + $0x1d8] sm:$0xff]
  %v173 = vld [vmem:[%s1 + $0x1e0] sm:$0xff]
  %v174 = vld [vmem:[%s1 + $0x1e8] sm:$0xff]
  %v175 = vld [vmem:[%s1 + $0x1f0] sm:$0xff]
  %v176 = vld [vmem:[%s1 + $0x1f8] sm:$0xff]
  %v177 = vmul.f32 %v49, %v113
  %v178 = vmul.f32 %v50, %v114
  %v179 = vmul.f32 %v51, %v115
  %v180 = vmul.f32 %v52, %v116
  %v181 = vmul.f32 %v53, %v117
  %v182 = vmul.f32 %v54, %v118
  %v183 = vmul.f32 %v55, %v119
  %v184 = vmul.f32 %v56, %v120
  %v185 = vmul.f32 %v57, %v121
  %v186 = vmul.f32 %v58, %v122
  %v187 = vmul.f32 %v59, %v123
  %v188 = vmul.f32 %v60, %v124
  %v189 = vmul.f32 %v61, %v125
  %v190 = vmul.f32 %v62, %v126
  %v191 = vmul.f32 %v63, %v127
  %v192 = vmul.f32 %v64, %v128
  %v193 = vmul.f32 %v65, %v129
  %v194 = vmul.f32 %v66, %v130
  %v195 = vmul.f32 %v67, %v131
  %v196 = vmul.f32 %v68, %v132
  %v197 = vmul.f32 %v69, %v133
  %v198 = vmul.f32 %v70, %v134
  %v199 = vmul.f32 %v71, %v135
  %v200 = vmul.f32 %v72, %v136
  %v201 = vmul.f32 %v73, %v137
  %v202 = vmul.f32 %v74, %v138
  %v203 = vmul.f32 %v75, %v139
  %v204 = vmul.f32 %v76, %v140
  %v205 = vmul.f32 %v77, %v141
  %v206 = vmul.f32 %v78, %v142
  %v207 = vmul.f32 %v79, %v143
  %v208 = vmul.f32 %v80, %v144
  %v209 = vmul.f32 %v81, %v145
  %v210 = vmul.f32 %v82, %v146
  %v211 = vmul.f32 %v83, %v147
  %v212 = vmul.f32 %v84, %v148
  %v213 = vmul.f32 %v85, %v149
  %v214 = vmul.f32 %v86, %v150
  %v215 = vmul.f32 %v87, %v151
  %v216 = vmul.f32 %v88, %v152
  %v217 = vmul.f32 %v89, %v153
  %v218 = vmul.f32 %v90, %v154
  %v219 = vmul.f32 %v91, %v155
  %v220 = vmul.f32 %v92, %v156
  %v221 = vmul.f32 %v93, %v157
  %v222 = vmul.f32 %v94, %v158
  %v223 = vmul.f32 %v95, %v159
  %v224 = vmul.f32 %v96, %v160
  %v225 = vmul.f32 %v97, %v161
  %v226 = vmul.f32 %v98, %v162
  %v227 = vmul.f32 %v99, %v163
  %v228 = vmul.f32 %v100, %v164
  %v229 = vmul.f32 %v101, %v165
  %v230 = vmul.f32 %v102, %v166
  %v231 = vmul.f32 %v103, %v167
  %v232 = vmul.f32 %v104, %v168
  %v233 = vmul.f32 %v105, %v169
  %v234 = vmul.f32 %v106, %v170
  %v235 = vmul.f32 %v107, %v171
  %v236 = vmul.f32 %v108, %v172
  %v237 = vmul.f32 %v109, %v173
  %v238 = vmul.f32 %v110, %v174
  %v239 = vmul.f32 %v111, %v175
  %v240 = vmul.f32 %v112, %v176
  %v241 = vadd.f32 %v177, %v178
  %v242 = vadd.f32 %v241, %v179
  %v243 = vadd.f32 %v242, %v180
  %v244 = vrot.slane %v243, 4
  %v245 = vadd.f32 %v243, %v244
  %v246 = vrot.slane %v245, 2
  %v247 = vadd.f32 %v245, %v246
  %v248 = vrot.slane %v247, 1
  %v249 = vadd.f32 %v247, %v248
  %v250 = vadd.f32 %v181, %v182
  %v251 = vadd.f32 %v250, %v183
  %v252 = vadd.f32 %v251, %v184
  %v253 = vrot.slane %v252, 4
  %v254 = vadd.f32 %v252, %v253
  %v255 = vrot.slane %v254, 2
  %v256 = vadd.f32 %v254, %v255
  %v257 = vrot.slane %v256, 1
  %v258 = vadd.f32 %v256, %v257
  %v259 = vadd.f32 %v185, %v186
  %v260 = vadd.f32 %v259, %v187
  %v261 = vadd.f32 %v260, %v188
  %v262 = vrot.slane %v261, 4
  %v263 = vadd.f32 %v261, %v262
  %v264 = vrot.slane %v263, 2
  %v265 = vadd.f32 %v263, %v264
  %v266 = vrot.slane %v265, 1
  %v267 = vadd.f32 %v265, %v266
  %v268 = vadd.f32 %v189, %v190
  %v269 = vadd.f32 %v268, %v191
  %v270 = vadd.f32 %v269, %v192
  %v271 = vrot.slane %v270, 4
  %v272 = vadd.f32 %v270, %v271
  %v273 = vrot.slane %v272, 2
  %v274 = vadd.f32 %v272, %v273
  %v275 = vrot.slane %v274, 1
  %v276 = vadd.f32 %v274, %v275
  %v277 = vadd.f32 %v193, %v194
  %v278 = vadd.f32 %v277, %v195
  %v279 = vadd.f32 %v278, %v196
  %v280 = vrot.slane %v279, 4
  %v281 = vadd.f32 %v279, %v280
  %v282 = vrot.slane %v281, 2
  %v283 = vadd.f32 %v281, %v282
  %v284 = vrot.slane %v283, 1
  %v285 = vadd.f32 %v283, %v284
  %v286 = vadd.f32 %v197, %v198
  %v287 = vadd.f32 %v286, %v199
  %v288 = vadd.f32 %v287, %v200
  %v289 = vrot.slane %v288, 4
  %v290 = vadd.f32 %v288, %v289
  %v291 = vrot.slane %v290, 2
  %v292 = vadd.f32 %v290, %v291
  %v293 = vrot.slane %v292, 1
  %v294 = vadd.f32 %v292, %v293
  %v295 = vadd.f32 %v201, %v202
  %v296 = vadd.f32 %v295, %v203
  %v297 = vadd.f32 %v296, %v204
  %v298 = vrot.slane %v297, 4
  %v299 = vadd.f32 %v297, %v298
  %v300 = vrot.slane %v299, 2
  %v301 = vadd.f32 %v299, %v300
  %v302 = vrot.slane %v301, 1
  %v303 = vadd.f32 %v301, %v302
  %v304 = vadd.f32 %v205, %v206
  %v305 = vadd.f32 %v304, %v207
  %v306 = vadd.f32 %v305, %v208
  %v307 = vrot.slane %v306, 4
  %v308 = vadd.f32 %v306, %v307
  %v309 = vrot.slane %v308, 2
  %v310 = vadd.f32 %v308, %v309
  %v311 = vrot.slane %v310, 1
  %v312 = vadd.f32 %v310, %v311
  %v313 = vadd.f32 %v209, %v210
  %v314 = vadd.f32 %v313, %v211
  %v315 = vadd.f32 %v314, %v212
  %v316 = vrot.slane %v315, 4
  %v317 = vadd.f32 %v315, %v316
  %v318 = vrot.slane %v317, 2
  %v319 = vadd.f32 %v317, %v318
  %v320 = vrot.slane %v319, 1
  %v321 = vadd.f32 %v319, %v320
  %v322 = vadd.f32 %v213, %v214
  %v323 = vadd.f32 %v322, %v215
  %v324 = vadd.f32 %v323, %v216
  %v325 = vrot.slane %v324, 4
  %v326 = vadd.f32 %v324, %v325
  %v327 = vrot.slane %v326, 2
  %v328 = vadd.f32 %v326, %v327
  %v329 = vrot.slane %v328, 1
  %v330 = vadd.f32 %v328, %v329
  %v331 = vadd.f32 %v217, %v218
  %v332 = vadd.f32 %v331, %v219
  %v333 = vadd.f32 %v332, %v220
  %v334 = vrot.slane %v333, 4
  %v335 = vadd.f32 %v333, %v334
  %v336 = vrot.slane %v335, 2
  %v337 = vadd.f32 %v335, %v336
  %v338 = vrot.slane %v337, 1
  %v339 = vadd.f32 %v337, %v338
  %v340 = vadd.f32 %v221, %v222
  %v341 = vadd.f32 %v340, %v223
  %v342 = vadd.f32 %v341, %v224
  %v343 = vrot.slane %v342, 4
  %v344 = vadd.f32 %v342, %v343
  %v345 = vrot.slane %v344, 2
  %v346 = vadd.f32 %v344, %v345
  %v347 = vrot.slane %v346, 1
  %v348 = vadd.f32 %v346, %v347
  %v349 = vadd.f32 %v225, %v226
  %v350 = vadd.f32 %v349, %v227
  %v351 = vadd.f32 %v350, %v228
  %v352 = vrot.slane %v351, 4
  %v353 = vadd.f32 %v351, %v352
  %v354 = vrot.slane %v353, 2
  %v355 = vadd.f32 %v353, %v354
  %v356 = vrot.slane %v355, 1
  %v357 = vadd.f32 %v355, %v356
  %v358 = vadd.f32 %v229, %v230
  %v359 = vadd.f32 %v358, %v231
  %v360 = vadd.f32 %v359, %v232
  %v361 = vrot.slane %v360, 4
  %v362 = vadd.f32 %v360, %v361
  %v363 = vrot.slane %v362, 2
  %v364 = vadd.f32 %v362, %v363
  %v365 = vrot.slane %v364, 1
  %v366 = vadd.f32 %v364, %v365
  %v367 = vadd.f32 %v233, %v234
  %v368 = vadd.f32 %v367, %v235
  %v369 = vadd.f32 %v368, %v236
  %v370 = vrot.slane %v369, 4
  %v371 = vadd.f32 %v369, %v370
  %v372 = vrot.slane %v371, 2
  %v373 = vadd.f32 %v371, %v372
  %v374 = vrot.slane %v373, 1
  %v375 = vadd.f32 %v373, %v374
  %v376 = vadd.f32 %v237, %v238
  %v377 = vadd.f32 %v376, %v239
  %v378 = vadd.f32 %v377, %v240
  %v379 = vrot.slane %v378, 4
  %v380 = vadd.f32 %v378, %v379
  %v381 = vrot.slane %v380, 2
  %v382 = vadd.f32 %v380, %v381
  %v383 = vrot.slane %v382, 1
  %v384 = vadd.f32 %v382, %v383
  %v385 = vld [vmem:[%s2] sm:$0xff]
  %v386 = vld [vmem:[%s2 + $0x8] sm:$0xff]
  %v389 = vrot.slane %v385, 1
  %v390 = vrot.slane %v385, 2
  %v391 = vrot.slane %v385, 3
  %v392 = vrot.slane %v385, 4
  %v393 = vrot.slane %v385, 5
  %v394 = vrot.slane %v385, 6
  %v395 = vrot.slane %v385, 7
  %v396 = vrot.slane %v386, 1
  %v397 = vrot.slane %v386, 2
  %v398 = vrot.slane %v386, 3
  %v399 = vrot.slane %v386, 4
  %v400 = vrot.slane %v386, 5
  %v401 = vrot.slane %v386, 6
  %v402 = vrot.slane %v386, 7
  %v419 = vadd.f32 %v249, %v385
  %v420 = vadd.f32 %v258, %v389
  %v421 = vadd.f32 %v267, %v390
  %v422 = vadd.f32 %v276, %v391
  %v423 = vadd.f32 %v285, %v392
  %v424 = vadd.f32 %v294, %v393
  %v425 = vadd.f32 %v303, %v394
  %v426 = vadd.f32 %v312, %v395
  %v427 = vadd.f32 %v321, %v386
  %v428 = vadd.f32 %v330, %v396
  %v429 = vadd.f32 %v339, %v397
  %v430 = vadd.f32 %v348, %v398
  %v431 = vadd.f32 %v357, %v399
  %v432 = vadd.f32 %v366, %v400
  %v433 = vadd.f32 %v375, %v401
  %v434 = vadd.f32 %v384, %v402
  %v435 = vld [vmem:[%s3] sm:$0xff]
  %v436 = vld [vmem:[%s3 + $0x8] sm:$0xff]
  %v439 = vrot.slane %v435, 1
  %v440 = vrot.slane %v435, 2
  %v441 = vrot.slane %v435, 3
  %v442 = vrot.slane %v435, 4
  %v443 = vrot.slane %v435, 5
  %v444 = vrot.slane %v435, 6
  %v445 = vrot.slane %v435, 7
  %v446 = vrot.slane %v436, 1
  %v447 = vrot.slane %v436, 2
  %v448 = vrot.slane %v436, 3
  %v449 = vrot.slane %v436, 4
  %v450 = vrot.slane %v436, 5
  %v451 = vrot.slane %v436, 6
  %v452 = vrot.slane %v436, 7
  %v469 = vadd.f32 %v419, %v435
  %v470 = vadd.f32 %v420, %v439
  %v471 = vadd.f32 %v421, %v440
  %v472 = vadd.f32 %v422, %v441
  %v473 = vadd.f32 %v423, %v442
  %v474 = vadd.f32 %v424, %v443
  %v475 = vadd.f32 %v425, %v444
  %v476 = vadd.f32 %v426, %v445
  %v477 = vadd.f32 %v427, %v436
  %v478 = vadd.f32 %v428, %v446
  %v479 = vadd.f32 %v429, %v447
  %v480 = vadd.f32 %v430, %v448
  %v481 = vadd.f32 %v431, %v449
  %v482 = vadd.f32 %v432, %v450
  %v483 = vadd.f32 %v433, %v451
  %v484 = vadd.f32 %v434, %v452
  %v485 = vld [vmem:[%s4] sm:$0xff]
  %v486 = vld [vmem:[%s4 + $0x8] sm:$0xff]
  %488 = vset.pattern.permute.xlu0 0
  %489 = vperm.xlu0 %488, %v485
  %v490 = vpop.permute.xlu0 %489
  %492 = vset.pattern.permute.xlu0 0
  %493 = vperm.xlu0 %492, %v486
  %v494 = vpop.permute.xlu0 %493
  %v495 = vrot.slane %v490, 1
  %v496 = vrot.slane %v490, 2
  %v497 = vrot.slane %v490, 3
  %v498 = vrot.slane %v490, 4
  %v499 = vrot.slane %v490, 5
  %v500 = vrot.slane %v490, 6
  %v501 = vrot.slane %v490, 7
  %v502 = vrot.slane %v494, 1
  %v503 = vrot.slane %v494, 2
  %v504 = vrot.slane %v494, 3
  %v505 = vrot.slane %v494, 4
  %v506 = vrot.slane %v494, 5
  %v507 = vrot.slane %v494, 6
  %v508 = vrot.slane %v494, 7
  %v525 = vadd.f32 %v469, %v490
  %v526 = vadd.f32 %v470, %v495
  %v527 = vadd.f32 %v471, %v496
  %v528 = vadd.f32 %v472, %v497
  %v529 = vadd.f32 %v473, %v498
  %v530 = vadd.f32 %v474, %v499
  %v531 = vadd.f32 %v475, %v500
  %v532 = vadd.f32 %v476, %v501
  %v533 = vadd.f32 %v477, %v494
  %v534 = vadd.f32 %v478, %v502
  %v535 = vadd.f32 %v479, %v503
  %v536 = vadd.f32 %v480, %v504
  %v537 = vadd.f32 %v481, %v505
  %v538 = vadd.f32 %v482, %v506
  %v539 = vadd.f32 %v483, %v507
  %v540 = vadd.f32 %v484, %v508
  %v541 = vxor.u32 %v525, 2147483648
  %v542 = vxor.u32 %v526, 2147483648
  %v543 = vxor.u32 %v527, 2147483648
  %v544 = vxor.u32 %v528, 2147483648
  %v545 = vxor.u32 %v529, 2147483648
  %v546 = vxor.u32 %v530, 2147483648
  %v547 = vxor.u32 %v531, 2147483648
  %v548 = vxor.u32 %v532, 2147483648
  %v549 = vxor.u32 %v533, 2147483648
  %v550 = vxor.u32 %v534, 2147483648
  %v551 = vxor.u32 %v535, 2147483648
  %v552 = vxor.u32 %v536, 2147483648
  %v553 = vxor.u32 %v537, 2147483648
  %v554 = vxor.u32 %v538, 2147483648
  %v555 = vxor.u32 %v539, 2147483648
  %v556 = vxor.u32 %v540, 2147483648
  %v557 = vmul.f32 %v541, 1.442695
  %v558 = vpow.pop %v557
  %v559 = vmul.f32 %v542, 1.442695
  %v560 = vpow.pop %v559
  %v561 = vmul.f32 %v543, 1.442695
  %v562 = vpow.pop %v561
  %v563 = vmul.f32 %v544, 1.442695
  %v564 = vpow.pop %v563
  %v565 = vmul.f32 %v545, 1.442695
  %v566 = vpow.pop %v565
  %v567 = vmul.f32 %v546, 1.442695
  %v568 = vpow.pop %v567
  %v569 = vmul.f32 %v547, 1.442695
  %v570 = vpow.pop %v569
  %v571 = vmul.f32 %v548, 1.442695
  %v572 = vpow.pop %v571
  %v573 = vmul.f32 %v549, 1.442695
  %v574 = vpow.pop %v573
  %v575 = vmul.f32 %v550, 1.442695
  %v576 = vpow.pop %v575
  %v577 = vmul.f32 %v551, 1.442695
  %v578 = vpow.pop %v577
  %v579 = vmul.f32 %v552, 1.442695
  %v580 = vpow.pop %v579
  %v581 = vmul.f32 %v553, 1.442695
  %v582 = vpow.pop %v581
  %v583 = vmul.f32 %v554, 1.442695
  %v584 = vpow.pop %v583
  %v585 = vmul.f32 %v555, 1.442695
  %v586 = vpow.pop %v585
  %v587 = vmul.f32 %v556, 1.442695
  %v588 = vpow.pop %v587
  %v589 = vadd.f32 %v558, 1.0
  %v590 = vadd.f32 %v560, 1.0
  %v591 = vadd.f32 %v562, 1.0
  %v592 = vadd.f32 %v564, 1.0
  %v593 = vadd.f32 %v566, 1.0
  %v594 = vadd.f32 %v568, 1.0
  %v595 = vadd.f32 %v570, 1.0
  %v596 = vadd.f32 %v572, 1.0
  %v597 = vadd.f32 %v574, 1.0
  %v598 = vadd.f32 %v576, 1.0
  %v599 = vadd.f32 %v578, 1.0
  %v600 = vadd.f32 %v580, 1.0
  %v601 = vadd.f32 %v582, 1.0
  %v602 = vadd.f32 %v584, 1.0
  %v603 = vadd.f32 %v586, 1.0
  %v604 = vadd.f32 %v588, 1.0
  %v605 = vrcp.pop %v589
  %v606 = vmul.f32 %v589, %v605
  %v607 = vsub.f32 1.0, %v606
  %v608 = vmul.f32 %v605, %v607
  %v609 = vadd.f32 %v605, %v608
  %vm610 = vweird.f32 %v589
  %vm611 = vweird.f32 %v605
  %vm612 = vmor %vm610, %vm611
  %v613 = vsel %vm612, %v605, %v609
  %v614 = vand.u32 2147483647, %v589
  %vm615 = vcmp.eq.f32.partialorder %v614, 8.507059e+37
  %v616 = vand.u32 %v589, 2147483648
  %v617 = vor.u32 1.1754944e-38, %v616
  %v618 = vsel %vm615, %v617, %v613
  %v619 = vmul.f32 1.0, %v618
  %v620 = vrcp.pop %v590
  %v621 = vmul.f32 %v590, %v620
  %v622 = vsub.f32 1.0, %v621
  %v623 = vmul.f32 %v620, %v622
  %v624 = vadd.f32 %v620, %v623
  %vm625 = vweird.f32 %v590
  %vm626 = vweird.f32 %v620
  %vm627 = vmor %vm625, %vm626
  %v628 = vsel %vm627, %v620, %v624
  %v629 = vand.u32 2147483647, %v590
  %vm630 = vcmp.eq.f32.partialorder %v629, 8.507059e+37
  %v631 = vand.u32 %v590, 2147483648
  %v632 = vor.u32 1.1754944e-38, %v631
  %v633 = vsel %vm630, %v632, %v628
  %v634 = vmul.f32 1.0, %v633
  %v635 = vrcp.pop %v591
  %v636 = vmul.f32 %v591, %v635
  %v637 = vsub.f32 1.0, %v636
  %v638 = vmul.f32 %v635, %v637
  %v639 = vadd.f32 %v635, %v638
  %vm640 = vweird.f32 %v591
  %vm641 = vweird.f32 %v635
  %vm642 = vmor %vm640, %vm641
  %v643 = vsel %vm642, %v635, %v639
  %v644 = vand.u32 2147483647, %v591
  %vm645 = vcmp.eq.f32.partialorder %v644, 8.507059e+37
  %v646 = vand.u32 %v591, 2147483648
  %v647 = vor.u32 1.1754944e-38, %v646
  %v648 = vsel %vm645, %v647, %v643
  %v649 = vmul.f32 1.0, %v648
  %v650 = vrcp.pop %v592
  %v651 = vmul.f32 %v592, %v650
  %v652 = vsub.f32 1.0, %v651
  %v653 = vmul.f32 %v650, %v652
  %v654 = vadd.f32 %v650, %v653
  %vm655 = vweird.f32 %v592
  %vm656 = vweird.f32 %v650
  %vm657 = vmor %vm655, %vm656
  %v658 = vsel %vm657, %v650, %v654
  %v659 = vand.u32 2147483647, %v592
  %vm660 = vcmp.eq.f32.partialorder %v659, 8.507059e+37
  %v661 = vand.u32 %v592, 2147483648
  %v662 = vor.u32 1.1754944e-38, %v661
  %v663 = vsel %vm660, %v662, %v658
  %v664 = vmul.f32 1.0, %v663
  %v665 = vrcp.pop %v593
  %v666 = vmul.f32 %v593, %v665
  %v667 = vsub.f32 1.0, %v666
  %v668 = vmul.f32 %v665, %v667
  %v669 = vadd.f32 %v665, %v668
  %vm670 = vweird.f32 %v593
  %vm671 = vweird.f32 %v665
  %vm672 = vmor %vm670, %vm671
  %v673 = vsel %vm672, %v665, %v669
  %v674 = vand.u32 2147483647, %v593
  %vm675 = vcmp.eq.f32.partialorder %v674, 8.507059e+37
  %v676 = vand.u32 %v593, 2147483648
  %v677 = vor.u32 1.1754944e-38, %v676
  %v678 = vsel %vm675, %v677, %v673
  %v679 = vmul.f32 1.0, %v678
  %v680 = vrcp.pop %v594
  %v681 = vmul.f32 %v594, %v680
  %v682 = vsub.f32 1.0, %v681
  %v683 = vmul.f32 %v680, %v682
  %v684 = vadd.f32 %v680, %v683
  %vm685 = vweird.f32 %v594
  %vm686 = vweird.f32 %v680
  %vm687 = vmor %vm685, %vm686
  %v688 = vsel %vm687, %v680, %v684
  %v689 = vand.u32 2147483647, %v594
  %vm690 = vcmp.eq.f32.partialorder %v689, 8.507059e+37
  %v691 = vand.u32 %v594, 2147483648
  %v692 = vor.u32 1.1754944e-38, %v691
  %v693 = vsel %vm690, %v692, %v688
  %v694 = vmul.f32 1.0, %v693
  %v695 = vrcp.pop %v595
  %v696 = vmul.f32 %v595, %v695
  %v697 = vsub.f32 1.0, %v696
  %v698 = vmul.f32 %v695, %v697
  %v699 = vadd.f32 %v695, %v698
  %vm700 = vweird.f32 %v595
  %vm701 = vweird.f32 %v695
  %vm702 = vmor %vm700, %vm701
  %v703 = vsel %vm702, %v695, %v699
  %v704 = vand.u32 2147483647, %v595
  %vm705 = vcmp.eq.f32.partialorder %v704, 8.507059e+37
  %v706 = vand.u32 %v595, 2147483648
  %v707 = vor.u32 1.1754944e-38, %v706
  %v708 = vsel %vm705, %v707, %v703
  %v709 = vmul.f32 1.0, %v708
  %v710 = vrcp.pop %v596
  %v711 = vmul.f32 %v596, %v710
  %v712 = vsub.f32 1.0, %v711
  %v713 = vmul.f32 %v710, %v712
  %v714 = vadd.f32 %v710, %v713
  %vm715 = vweird.f32 %v596
  %vm716 = vweird.f32 %v710
  %vm717 = vmor %vm715, %vm716
  %v718 = vsel %vm717, %v710, %v714
  %v719 = vand.u32 2147483647, %v596
  %vm720 = vcmp.eq.f32.partialorder %v719, 8.507059e+37
  %v721 = vand.u32 %v596, 2147483648
  %v722 = vor.u32 1.1754944e-38, %v721
  %v723 = vsel %vm720, %v722, %v718
  %v724 = vmul.f32 1.0, %v723
  %v725 = vrcp.pop %v597
  %v726 = vmul.f32 %v597, %v725
  %v727 = vsub.f32 1.0, %v726
  %v728 = vmul.f32 %v725, %v727
  %v729 = vadd.f32 %v725, %v728
  %vm730 = vweird.f32 %v597
  %vm731 = vweird.f32 %v725
  %vm732 = vmor %vm730, %vm731
  %v733 = vsel %vm732, %v725, %v729
  %v734 = vand.u32 2147483647, %v597
  %vm735 = vcmp.eq.f32.partialorder %v734, 8.507059e+37
  %v736 = vand.u32 %v597, 2147483648
  %v737 = vor.u32 1.1754944e-38, %v736
  %v738 = vsel %vm735, %v737, %v733
  %v739 = vmul.f32 1.0, %v738
  %v740 = vrcp.pop %v598
  %v741 = vmul.f32 %v598, %v740
  %v742 = vsub.f32 1.0, %v741
  %v743 = vmul.f32 %v740, %v742
  %v744 = vadd.f32 %v740, %v743
  %vm745 = vweird.f32 %v598
  %vm746 = vweird.f32 %v740
  %vm747 = vmor %vm745, %vm746
  %v748 = vsel %vm747, %v740, %v744
  %v749 = vand.u32 2147483647, %v598
  %vm750 = vcmp.eq.f32.partialorder %v749, 8.507059e+37
  %v751 = vand.u32 %v598, 2147483648
  %v752 = vor.u32 1.1754944e-38, %v751
  %v753 = vsel %vm750, %v752, %v748
  %v754 = vmul.f32 1.0, %v753
  %v755 = vrcp.pop %v599
  %v756 = vmul.f32 %v599, %v755
  %v757 = vsub.f32 1.0, %v756
  %v758 = vmul.f32 %v755, %v757
  %v759 = vadd.f32 %v755, %v758
  %vm760 = vweird.f32 %v599
  %vm761 = vweird.f32 %v755
  %vm762 = vmor %vm760, %vm761
  %v763 = vsel %vm762, %v755, %v759
  %v764 = vand.u32 2147483647, %v599
  %vm765 = vcmp.eq.f32.partialorder %v764, 8.507059e+37
  %v766 = vand.u32 %v599, 2147483648
  %v767 = vor.u32 1.1754944e-38, %v766
  %v768 = vsel %vm765, %v767, %v763
  %v769 = vmul.f32 1.0, %v768
  %v770 = vrcp.pop %v600
  %v771 = vmul.f32 %v600, %v770
  %v772 = vsub.f32 1.0, %v771
  %v773 = vmul.f32 %v770, %v772
  %v774 = vadd.f32 %v770, %v773
  %vm775 = vweird.f32 %v600
  %vm776 = vweird.f32 %v770
  %vm777 = vmor %vm775, %vm776
  %v778 = vsel %vm777, %v770, %v774
  %v779 = vand.u32 2147483647, %v600
  %vm780 = vcmp.eq.f32.partialorder %v779, 8.507059e+37
  %v781 = vand.u32 %v600, 2147483648
  %v782 = vor.u32 1.1754944e-38, %v781
  %v783 = vsel %vm780, %v782, %v778
  %v784 = vmul.f32 1.0, %v783
  %v785 = vrcp.pop %v601
  %v786 = vmul.f32 %v601, %v785
  %v787 = vsub.f32 1.0, %v786
  %v788 = vmul.f32 %v785, %v787
  %v789 = vadd.f32 %v785, %v788
  %vm790 = vweird.f32 %v601
  %vm791 = vweird.f32 %v785
  %vm792 = vmor %vm790, %vm791
  %v793 = vsel %vm792, %v785, %v789
  %v794 = vand.u32 2147483647, %v601
  %vm795 = vcmp.eq.f32.partialorder %v794, 8.507059e+37
  %v796 = vand.u32 %v601, 2147483648
  %v797 = vor.u32 1.1754944e-38, %v796
  %v798 = vsel %vm795, %v797, %v793
  %v799 = vmul.f32 1.0, %v798
  %v800 = vrcp.pop %v602
  %v801 = vmul.f32 %v602, %v800
  %v802 = vsub.f32 1.0, %v801
  %v803 = vmul.f32 %v800, %v802
  %v804 = vadd.f32 %v800, %v803
  %vm805 = vweird.f32 %v602
  %vm806 = vweird.f32 %v800
  %vm807 = vmor %vm805, %vm806
  %v808 = vsel %vm807, %v800, %v804
  %v809 = vand.u32 2147483647, %v602
  %vm810 = vcmp.eq.f32.partialorder %v809, 8.507059e+37
  %v811 = vand.u32 %v602, 2147483648
  %v812 = vor.u32 1.1754944e-38, %v811
  %v813 = vsel %vm810, %v812, %v808
  %v814 = vmul.f32 1.0, %v813
  %v815 = vrcp.pop %v603
  %v816 = vmul.f32 %v603, %v815
  %v817 = vsub.f32 1.0, %v816
  %v818 = vmul.f32 %v815, %v817
  %v819 = vadd.f32 %v815, %v818
  %vm820 = vweird.f32 %v603
  %vm821 = vweird.f32 %v815
  %vm822 = vmor %vm820, %vm821
  %v823 = vsel %vm822, %v815, %v819
  %v824 = vand.u32 2147483647, %v603
  %vm825 = vcmp.eq.f32.partialorder %v824, 8.507059e+37
  %v826 = vand.u32 %v603, 2147483648
  %v827 = vor.u32 1.1754944e-38, %v826
  %v828 = vsel %vm825, %v827, %v823
  %v829 = vmul.f32 1.0, %v828
  %v830 = vrcp.pop %v604
  %v831 = vmul.f32 %v604, %v830
  %v832 = vsub.f32 1.0, %v831
  %v833 = vmul.f32 %v830, %v832
  %v834 = vadd.f32 %v830, %v833
  %vm835 = vweird.f32 %v604
  %vm836 = vweird.f32 %v830
  %vm837 = vmor %vm835, %vm836
  %v838 = vsel %vm837, %v830, %v834
  %v839 = vand.u32 2147483647, %v604
  %vm840 = vcmp.eq.f32.partialorder %v839, 8.507059e+37
  %v841 = vand.u32 %v604, 2147483648
  %v842 = vor.u32 1.1754944e-38, %v841
  %v843 = vsel %vm840, %v842, %v838
  %v844 = vmul.f32 1.0, %v843
  %v845 = vld [vmem:[%s5] sm:$0xff]
  %v846 = vld [vmem:[%s5 + $0x8] sm:$0xff]
  %v849 = vrot.slane %v845, 1
  %v850 = vrot.slane %v845, 2
  %v851 = vrot.slane %v845, 3
  %v852 = vrot.slane %v845, 4
  %v853 = vrot.slane %v845, 5
  %v854 = vrot.slane %v845, 6
  %v855 = vrot.slane %v845, 7
  %v856 = vrot.slane %v846, 1
  %v857 = vrot.slane %v846, 2
  %v858 = vrot.slane %v846, 3
  %v859 = vrot.slane %v846, 4
  %v860 = vrot.slane %v846, 5
  %v861 = vrot.slane %v846, 6
  %v862 = vrot.slane %v846, 7
  %v879 = vadd.f32 %v249, %v845
  %v880 = vadd.f32 %v258, %v849
  %v881 = vadd.f32 %v267, %v850
  %v882 = vadd.f32 %v276, %v851
  %v883 = vadd.f32 %v285, %v852
  %v884 = vadd.f32 %v294, %v853
  %v885 = vadd.f32 %v303, %v854
  %v886 = vadd.f32 %v312, %v855
  %v887 = vadd.f32 %v321, %v846
  %v888 = vadd.f32 %v330, %v856
  %v889 = vadd.f32 %v339, %v857
  %v890 = vadd.f32 %v348, %v858
  %v891 = vadd.f32 %v357, %v859
  %v892 = vadd.f32 %v366, %v860
  %v893 = vadd.f32 %v375, %v861
  %v894 = vadd.f32 %v384, %v862
  %v895 = vld [vmem:[%s6] sm:$0xff]
  %v896 = vld [vmem:[%s6 + $0x8] sm:$0xff]
  %v899 = vrot.slane %v895, 1
  %v900 = vrot.slane %v895, 2
  %v901 = vrot.slane %v895, 3
  %v902 = vrot.slane %v895, 4
  %v903 = vrot.slane %v895, 5
  %v904 = vrot.slane %v895, 6
  %v905 = vrot.slane %v895, 7
  %v906 = vrot.slane %v896, 1
  %v907 = vrot.slane %v896, 2
  %v908 = vrot.slane %v896, 3
  %v909 = vrot.slane %v896, 4
  %v910 = vrot.slane %v896, 5
  %v911 = vrot.slane %v896, 6
  %v912 = vrot.slane %v896, 7
  %v929 = vadd.f32 %v879, %v895
  %v930 = vadd.f32 %v880, %v899
  %v931 = vadd.f32 %v881, %v900
  %v932 = vadd.f32 %v882, %v901
  %v933 = vadd.f32 %v883, %v902
  %v934 = vadd.f32 %v884, %v903
  %v935 = vadd.f32 %v885, %v904
  %v936 = vadd.f32 %v886, %v905
  %v937 = vadd.f32 %v887, %v896
  %v938 = vadd.f32 %v888, %v906
  %v939 = vadd.f32 %v889, %v907
  %v940 = vadd.f32 %v890, %v908
  %v941 = vadd.f32 %v891, %v909
  %v942 = vadd.f32 %v892, %v910
  %v943 = vadd.f32 %v893, %v911
  %v944 = vadd.f32 %v894, %v912
  %v945 = vld [vmem:[%s7] sm:$0xff]
  %v946 = vld [vmem:[%s7 + $0x8] sm:$0xff]
  %948 = vset.pattern.permute.xlu0 0
  %949 = vperm.xlu0 %948, %v945
  %v950 = vpop.permute.xlu0 %949
  %952 = vset.pattern.permute.xlu0 0
  %953 = vperm.xlu0 %952, %v946
  %v954 = vpop.permute.xlu0 %953
  %v955 = vrot.slane %v950, 1
  %v956 = vrot.slane %v950, 2
  %v957 = vrot.slane %v950, 3
  %v958 = vrot.slane %v950, 4
  %v959 = vrot.slane %v950, 5
  %v960 = vrot.slane %v950, 6
  %v961 = vrot.slane %v950, 7
  %v962 = vrot.slane %v954, 1
  %v963 = vrot.slane %v954, 2
  %v964 = vrot.slane %v954, 3
  %v965 = vrot.slane %v954, 4
  %v966 = vrot.slane %v954, 5
  %v967 = vrot.slane %v954, 6
  %v968 = vrot.slane %v954, 7
  %v985 = vadd.f32 %v929, %v950
  %v986 = vadd.f32 %v930, %v955
  %v987 = vadd.f32 %v931, %v956
  %v988 = vadd.f32 %v932, %v957
  %v989 = vadd.f32 %v933, %v958
  %v990 = vadd.f32 %v934, %v959
  %v991 = vadd.f32 %v935, %v960
  %v992 = vadd.f32 %v936, %v961
  %v993 = vadd.f32 %v937, %v954
  %v994 = vadd.f32 %v938, %v962
  %v995 = vadd.f32 %v939, %v963
  %v996 = vadd.f32 %v940, %v964
  %v997 = vadd.f32 %v941, %v965
  %v998 = vadd.f32 %v942, %v966
  %v999 = vadd.f32 %v943, %v967
  %v1000 = vadd.f32 %v944, %v968
  %v1001 = vxor.u32 %v985, 2147483648
  %v1002 = vxor.u32 %v986, 2147483648
  %v1003 = vxor.u32 %v987, 2147483648
  %v1004 = vxor.u32 %v988, 2147483648
  %v1005 = vxor.u32 %v989, 2147483648
  %v1006 = vxor.u32 %v990, 2147483648
  %v1007 = vxor.u32 %v991, 2147483648
  %v1008 = vxor.u32 %v992, 2147483648
  %v1009 = vxor.u32 %v993, 2147483648
  %v1010 = vxor.u32 %v994, 2147483648
  %v1011 = vxor.u32 %v995, 2147483648
  %v1012 = vxor.u32 %v996, 2147483648
  %v1013 = vxor.u32 %v997, 2147483648
  %v1014 = vxor.u32 %v998, 2147483648
  %v1015 = vxor.u32 %v999, 2147483648
  %v1016 = vxor.u32 %v1000, 2147483648
  %v1017 = vmul.f32 %v1001, 1.442695
  %v1018 = vpow.pop %v1017
  %v1019 = vmul.f32 %v1002, 1.442695
  %v1020 = vpow.pop %v1019
  %v1021 = vmul.f32 %v1003, 1.442695
  %v1022 = vpow.pop %v1021
  %v1023 = vmul.f32 %v1004, 1.442695
  %v1024 = vpow.pop %v1023
  %v1025 = vmul.f32 %v1005, 1.442695
  %v1026 = vpow.pop %v1025
  %v1027 = vmul.f32 %v1006, 1.442695
  %v1028 = vpow.pop %v1027
  %v1029 = vmul.f32 %v1007, 1.442695
  %v1030 = vpow.pop %v1029
  %v1031 = vmul.f32 %v1008, 1.442695
  %v1032 = vpow.pop %v1031
  %v1033 = vmul.f32 %v1009, 1.442695
  %v1034 = vpow.pop %v1033
  %v1035 = vmul.f32 %v1010, 1.442695
  %v1036 = vpow.pop %v1035
  %v1037 = vmul.f32 %v1011, 1.442695
  %v1038 = vpow.pop %v1037
  %v1039 = vmul.f32 %v1012, 1.442695
  %v1040 = vpow.pop %v1039
  %v1041 = vmul.f32 %v1013, 1.442695
  %v1042 = vpow.pop %v1041
  %v1043 = vmul.f32 %v1014, 1.442695
  %v1044 = vpow.pop %v1043
  %v1045 = vmul.f32 %v1015, 1.442695
  %v1046 = vpow.pop %v1045
  %v1047 = vmul.f32 %v1016, 1.442695
  %v1048 = vpow.pop %v1047
  %v1049 = vadd.f32 %v1018, 1.0
  %v1050 = vadd.f32 %v1020, 1.0
  %v1051 = vadd.f32 %v1022, 1.0
  %v1052 = vadd.f32 %v1024, 1.0
  %v1053 = vadd.f32 %v1026, 1.0
  %v1054 = vadd.f32 %v1028, 1.0
  %v1055 = vadd.f32 %v1030, 1.0
  %v1056 = vadd.f32 %v1032, 1.0
  %v1057 = vadd.f32 %v1034, 1.0
  %v1058 = vadd.f32 %v1036, 1.0
  %v1059 = vadd.f32 %v1038, 1.0
  %v1060 = vadd.f32 %v1040, 1.0
  %v1061 = vadd.f32 %v1042, 1.0
  %v1062 = vadd.f32 %v1044, 1.0
  %v1063 = vadd.f32 %v1046, 1.0
  %v1064 = vadd.f32 %v1048, 1.0
  %v1065 = vrcp.pop %v1049
  %v1066 = vmul.f32 %v1049, %v1065
  %v1067 = vsub.f32 1.0, %v1066
  %v1068 = vmul.f32 %v1065, %v1067
  %v1069 = vadd.f32 %v1065, %v1068
  %vm1070 = vweird.f32 %v1049
  %vm1071 = vweird.f32 %v1065
  %vm1072 = vmor %vm1070, %vm1071
  %v1073 = vsel %vm1072, %v1065, %v1069
  %v1074 = vand.u32 2147483647, %v1049
  %vm1075 = vcmp.eq.f32.partialorder %v1074, 8.507059e+37
  %v1076 = vand.u32 %v1049, 2147483648
  %v1077 = vor.u32 1.1754944e-38, %v1076
  %v1078 = vsel %vm1075, %v1077, %v1073
  %v1079 = vmul.f32 1.0, %v1078
  %v1080 = vrcp.pop %v1050
  %v1081 = vmul.f32 %v1050, %v1080
  %v1082 = vsub.f32 1.0, %v1081
  %v1083 = vmul.f32 %v1080, %v1082
  %v1084 = vadd.f32 %v1080, %v1083
  %vm1085 = vweird.f32 %v1050
  %vm1086 = vweird.f32 %v1080
  %vm1087 = vmor %vm1085, %vm1086
  %v1088 = vsel %vm1087, %v1080, %v1084
  %v1089 = vand.u32 2147483647, %v1050
  %vm1090 = vcmp.eq.f32.partialorder %v1089, 8.507059e+37
  %v1091 = vand.u32 %v1050, 2147483648
  %v1092 = vor.u32 1.1754944e-38, %v1091
  %v1093 = vsel %vm1090, %v1092, %v1088
  %v1094 = vmul.f32 1.0, %v1093
  %v1095 = vrcp.pop %v1051
  %v1096 = vmul.f32 %v1051, %v1095
  %v1097 = vsub.f32 1.0, %v1096
  %v1098 = vmul.f32 %v1095, %v1097
  %v1099 = vadd.f32 %v1095, %v1098
  %vm1100 = vweird.f32 %v1051
  %vm1101 = vweird.f32 %v1095
  %vm1102 = vmor %vm1100, %vm1101
  %v1103 = vsel %vm1102, %v1095, %v1099
  %v1104 = vand.u32 2147483647, %v1051
  %vm1105 = vcmp.eq.f32.partialorder %v1104, 8.507059e+37
  %v1106 = vand.u32 %v1051, 2147483648
  %v1107 = vor.u32 1.1754944e-38, %v1106
  %v1108 = vsel %vm1105, %v1107, %v1103
  %v1109 = vmul.f32 1.0, %v1108
  %v1110 = vrcp.pop %v1052
  %v1111 = vmul.f32 %v1052, %v1110
  %v1112 = vsub.f32 1.0, %v1111
  %v1113 = vmul.f32 %v1110, %v1112
  %v1114 = vadd.f32 %v1110, %v1113
  %vm1115 = vweird.f32 %v1052
  %vm1116 = vweird.f32 %v1110
  %vm1117 = vmor %vm1115, %vm1116
  %v1118 = vsel %vm1117, %v1110, %v1114
  %v1119 = vand.u32 2147483647, %v1052
  %vm1120 = vcmp.eq.f32.partialorder %v1119, 8.507059e+37
  %v1121 = vand.u32 %v1052, 2147483648
  %v1122 = vor.u32 1.1754944e-38, %v1121
  %v1123 = vsel %vm1120, %v1122, %v1118
  %v1124 = vmul.f32 1.0, %v1123
  %v1125 = vrcp.pop %v1053
  %v1126 = vmul.f32 %v1053, %v1125
  %v1127 = vsub.f32 1.0, %v1126
  %v1128 = vmul.f32 %v1125, %v1127
  %v1129 = vadd.f32 %v1125, %v1128
  %vm1130 = vweird.f32 %v1053
  %vm1131 = vweird.f32 %v1125
  %vm1132 = vmor %vm1130, %vm1131
  %v1133 = vsel %vm1132, %v1125, %v1129
  %v1134 = vand.u32 2147483647, %v1053
  %vm1135 = vcmp.eq.f32.partialorder %v1134, 8.507059e+37
  %v1136 = vand.u32 %v1053, 2147483648
  %v1137 = vor.u32 1.1754944e-38, %v1136
  %v1138 = vsel %vm1135, %v1137, %v1133
  %v1139 = vmul.f32 1.0, %v1138
  %v1140 = vrcp.pop %v1054
  %v1141 = vmul.f32 %v1054, %v1140
  %v1142 = vsub.f32 1.0, %v1141
  %v1143 = vmul.f32 %v1140, %v1142
  %v1144 = vadd.f32 %v1140, %v1143
  %vm1145 = vweird.f32 %v1054
  %vm1146 = vweird.f32 %v1140
  %vm1147 = vmor %vm1145, %vm1146
  %v1148 = vsel %vm1147, %v1140, %v1144
  %v1149 = vand.u32 2147483647, %v1054
  %vm1150 = vcmp.eq.f32.partialorder %v1149, 8.507059e+37
  %v1151 = vand.u32 %v1054, 2147483648
  %v1152 = vor.u32 1.1754944e-38, %v1151
  %v1153 = vsel %vm1150, %v1152, %v1148
  %v1154 = vmul.f32 1.0, %v1153
  %v1155 = vrcp.pop %v1055
  %v1156 = vmul.f32 %v1055, %v1155
  %v1157 = vsub.f32 1.0, %v1156
  %v1158 = vmul.f32 %v1155, %v1157
  %v1159 = vadd.f32 %v1155, %v1158
  %vm1160 = vweird.f32 %v1055
  %vm1161 = vweird.f32 %v1155
  %vm1162 = vmor %vm1160, %vm1161
  %v1163 = vsel %vm1162, %v1155, %v1159
  %v1164 = vand.u32 2147483647, %v1055
  %vm1165 = vcmp.eq.f32.partialorder %v1164, 8.507059e+37
  %v1166 = vand.u32 %v1055, 2147483648
  %v1167 = vor.u32 1.1754944e-38, %v1166
  %v1168 = vsel %vm1165, %v1167, %v1163
  %v1169 = vmul.f32 1.0, %v1168
  %v1170 = vrcp.pop %v1056
  %v1171 = vmul.f32 %v1056, %v1170
  %v1172 = vsub.f32 1.0, %v1171
  %v1173 = vmul.f32 %v1170, %v1172
  %v1174 = vadd.f32 %v1170, %v1173
  %vm1175 = vweird.f32 %v1056
  %vm1176 = vweird.f32 %v1170
  %vm1177 = vmor %vm1175, %vm1176
  %v1178 = vsel %vm1177, %v1170, %v1174
  %v1179 = vand.u32 2147483647, %v1056
  %vm1180 = vcmp.eq.f32.partialorder %v1179, 8.507059e+37
  %v1181 = vand.u32 %v1056, 2147483648
  %v1182 = vor.u32 1.1754944e-38, %v1181
  %v1183 = vsel %vm1180, %v1182, %v1178
  %v1184 = vmul.f32 1.0, %v1183
  %v1185 = vrcp.pop %v1057
  %v1186 = vmul.f32 %v1057, %v1185
  %v1187 = vsub.f32 1.0, %v1186
  %v1188 = vmul.f32 %v1185, %v1187
  %v1189 = vadd.f32 %v1185, %v1188
  %vm1190 = vweird.f32 %v1057
  %vm1191 = vweird.f32 %v1185
  %vm1192 = vmor %vm1190, %vm1191
  %v1193 = vsel %vm1192, %v1185, %v1189
  %v1194 = vand.u32 2147483647, %v1057
  %vm1195 = vcmp.eq.f32.partialorder %v1194, 8.507059e+37
  %v1196 = vand.u32 %v1057, 2147483648
  %v1197 = vor.u32 1.1754944e-38, %v1196
  %v1198 = vsel %vm1195, %v1197, %v1193
  %v1199 = vmul.f32 1.0, %v1198
  %v1200 = vrcp.pop %v1058
  %v1201 = vmul.f32 %v1058, %v1200
  %v1202 = vsub.f32 1.0, %v1201
  %v1203 = vmul.f32 %v1200, %v1202
  %v1204 = vadd.f32 %v1200, %v1203
  %vm1205 = vweird.f32 %v1058
  %vm1206 = vweird.f32 %v1200
  %vm1207 = vmor %vm1205, %vm1206
  %v1208 = vsel %vm1207, %v1200, %v1204
  %v1209 = vand.u32 2147483647, %v1058
  %vm1210 = vcmp.eq.f32.partialorder %v1209, 8.507059e+37
  %v1211 = vand.u32 %v1058, 2147483648
  %v1212 = vor.u32 1.1754944e-38, %v1211
  %v1213 = vsel %vm1210, %v1212, %v1208
  %v1214 = vmul.f32 1.0, %v1213
  %v1215 = vrcp.pop %v1059
  %v1216 = vmul.f32 %v1059, %v1215
  %v1217 = vsub.f32 1.0, %v1216
  %v1218 = vmul.f32 %v1215, %v1217
  %v1219 = vadd.f32 %v1215, %v1218
  %vm1220 = vweird.f32 %v1059
  %vm1221 = vweird.f32 %v1215
  %vm1222 = vmor %vm1220, %vm1221
  %v1223 = vsel %vm1222, %v1215, %v1219
  %v1224 = vand.u32 2147483647, %v1059
  %vm1225 = vcmp.eq.f32.partialorder %v1224, 8.507059e+37
  %v1226 = vand.u32 %v1059, 2147483648
  %v1227 = vor.u32 1.1754944e-38, %v1226
  %v1228 = vsel %vm1225, %v1227, %v1223
  %v1229 = vmul.f32 1.0, %v1228
  %v1230 = vrcp.pop %v1060
  %v1231 = vmul.f32 %v1060, %v1230
  %v1232 = vsub.f32 1.0, %v1231
  %v1233 = vmul.f32 %v1230, %v1232
  %v1234 = vadd.f32 %v1230, %v1233
  %vm1235 = vweird.f32 %v1060
  %vm1236 = vweird.f32 %v1230
  %vm1237 = vmor %vm1235, %vm1236
  %v1238 = vsel %vm1237, %v1230, %v1234
  %v1239 = vand.u32 2147483647, %v1060
  %vm1240 = vcmp.eq.f32.partialorder %v1239, 8.507059e+37
  %v1241 = vand.u32 %v1060, 2147483648
  %v1242 = vor.u32 1.1754944e-38, %v1241
  %v1243 = vsel %vm1240, %v1242, %v1238
  %v1244 = vmul.f32 1.0, %v1243
  %v1245 = vrcp.pop %v1061
  %v1246 = vmul.f32 %v1061, %v1245
  %v1247 = vsub.f32 1.0, %v1246
  %v1248 = vmul.f32 %v1245, %v1247
  %v1249 = vadd.f32 %v1245, %v1248
  %vm1250 = vweird.f32 %v1061
  %vm1251 = vweird.f32 %v1245
  %vm1252 = vmor %vm1250, %vm1251
  %v1253 = vsel %vm1252, %v1245, %v1249
  %v1254 = vand.u32 2147483647, %v1061
  %vm1255 = vcmp.eq.f32.partialorder %v1254, 8.507059e+37
  %v1256 = vand.u32 %v1061, 2147483648
  %v1257 = vor.u32 1.1754944e-38, %v1256
  %v1258 = vsel %vm1255, %v1257, %v1253
  %v1259 = vmul.f32 1.0, %v1258
  %v1260 = vrcp.pop %v1062
  %v1261 = vmul.f32 %v1062, %v1260
  %v1262 = vsub.f32 1.0, %v1261
  %v1263 = vmul.f32 %v1260, %v1262
  %v1264 = vadd.f32 %v1260, %v1263
  %vm1265 = vweird.f32 %v1062
  %vm1266 = vweird.f32 %v1260
  %vm1267 = vmor %vm1265, %vm1266
  %v1268 = vsel %vm1267, %v1260, %v1264
  %v1269 = vand.u32 2147483647, %v1062
  %vm1270 = vcmp.eq.f32.partialorder %v1269, 8.507059e+37
  %v1271 = vand.u32 %v1062, 2147483648
  %v1272 = vor.u32 1.1754944e-38, %v1271
  %v1273 = vsel %vm1270, %v1272, %v1268
  %v1274 = vmul.f32 1.0, %v1273
  %v1275 = vrcp.pop %v1063
  %v1276 = vmul.f32 %v1063, %v1275
  %v1277 = vsub.f32 1.0, %v1276
  %v1278 = vmul.f32 %v1275, %v1277
  %v1279 = vadd.f32 %v1275, %v1278
  %vm1280 = vweird.f32 %v1063
  %vm1281 = vweird.f32 %v1275
  %vm1282 = vmor %vm1280, %vm1281
  %v1283 = vsel %vm1282, %v1275, %v1279
  %v1284 = vand.u32 2147483647, %v1063
  %vm1285 = vcmp.eq.f32.partialorder %v1284, 8.507059e+37
  %v1286 = vand.u32 %v1063, 2147483648
  %v1287 = vor.u32 1.1754944e-38, %v1286
  %v1288 = vsel %vm1285, %v1287, %v1283
  %v1289 = vmul.f32 1.0, %v1288
  %v1290 = vrcp.pop %v1064
  %v1291 = vmul.f32 %v1064, %v1290
  %v1292 = vsub.f32 1.0, %v1291
  %v1293 = vmul.f32 %v1290, %v1292
  %v1294 = vadd.f32 %v1290, %v1293
  %vm1295 = vweird.f32 %v1064
  %vm1296 = vweird.f32 %v1290
  %vm1297 = vmor %vm1295, %vm1296
  %v1298 = vsel %vm1297, %v1290, %v1294
  %v1299 = vand.u32 2147483647, %v1064
  %vm1300 = vcmp.eq.f32.partialorder %v1299, 8.507059e+37
  %v1301 = vand.u32 %v1064, 2147483648
  %v1302 = vor.u32 1.1754944e-38, %v1301
  %v1303 = vsel %vm1300, %v1302, %v1298
  %v1304 = vmul.f32 1.0, %v1303
  %v1305 = vadd.f32 %v619, %v1079
  %v1306 = vadd.f32 %v634, %v1094
  %v1307 = vadd.f32 %v649, %v1109
  %v1308 = vadd.f32 %v664, %v1124
  %v1309 = vadd.f32 %v679, %v1139
  %v1310 = vadd.f32 %v694, %v1154
  %v1311 = vadd.f32 %v709, %v1169
  %v1312 = vadd.f32 %v724, %v1184
  %v1313 = vadd.f32 %v739, %v1199
  %v1314 = vadd.f32 %v754, %v1214
  %v1315 = vadd.f32 %v769, %v1229
  %v1316 = vadd.f32 %v784, %v1244
  %v1317 = vadd.f32 %v799, %v1259
  %v1318 = vadd.f32 %v814, %v1274
  %v1319 = vadd.f32 %v829, %v1289
  %v1320 = vadd.f32 %v844, %v1304
  %v1321 = vmul.f32 %v1305, 0.5
  %v1322 = vmul.f32 %v1306, 0.5
  %v1323 = vmul.f32 %v1307, 0.5
  %v1324 = vmul.f32 %v1308, 0.5
  %v1325 = vmul.f32 %v1309, 0.5
  %v1326 = vmul.f32 %v1310, 0.5
  %v1327 = vmul.f32 %v1311, 0.5
  %v1328 = vmul.f32 %v1312, 0.5
  %v1329 = vmul.f32 %v1313, 0.5
  %v1330 = vmul.f32 %v1314, 0.5
  %v1331 = vmul.f32 %v1315, 0.5
  %v1332 = vmul.f32 %v1316, 0.5
  %v1333 = vmul.f32 %v1317, 0.5
  %v1334 = vmul.f32 %v1318, 0.5
  %v1335 = vmul.f32 %v1319, 0.5
  %v1336 = vmul.f32 %v1320, 0.5
  %v1337 = vld [vmem:[%s8] sm:$0xff]
  %v1338 = vld [vmem:[%s8 + $0x8] sm:$0xff]
  %v1339 = vld [vmem:[%s9] sm:$0xff]
  %v1340 = vld [vmem:[%s9 + $0x8] sm:$0xff]
  %v1341 = vadd.f32 %v1337, %v1339
  %v1342 = vadd.f32 %v1338, %v1340
  %v1343 = vld [vmem:[%s10] sm:$0xff]
  %v1344 = vld [vmem:[%s10 + $0x8] sm:$0xff]
  %1346 = vset.pattern.permute.xlu0 0
  %1347 = vperm.xlu0 %1346, %v1343
  %v1348 = vpop.permute.xlu0 %1347
  %1351 = vset.pattern.permute.xlu0 0
  %1352 = vperm.xlu0 %1351, %v1344
  %v1353 = vpop.permute.xlu0 %1352
  %v1355 = vadd.f32 %v1341, %v1348
  %v1356 = vadd.f32 %v1342, %v1353
  %v1359 = vrot.slane %v1355, 1
  %v1360 = vrot.slane %v1355, 2
  %v1361 = vrot.slane %v1355, 3
  %v1362 = vrot.slane %v1355, 4
  %v1363 = vrot.slane %v1355, 5
  %v1364 = vrot.slane %v1355, 6
  %v1365 = vrot.slane %v1355, 7
  %v1366 = vrot.slane %v1356, 1
  %v1367 = vrot.slane %v1356, 2
  %v1368 = vrot.slane %v1356, 3
  %v1369 = vrot.slane %v1356, 4
  %v1370 = vrot.slane %v1356, 5
  %v1371 = vrot.slane %v1356, 6
  %v1372 = vrot.slane %v1356, 7
  %v1389 = vmul.f32 %v1321, %v1355
  %v1390 = vmul.f32 %v1322, %v1359
  %v1391 = vmul.f32 %v1323, %v1360
  %v1392 = vmul.f32 %v1324, %v1361
  %v1393 = vmul.f32 %v1325, %v1362
  %v1394 = vmul.f32 %v1326, %v1363
  %v1395 = vmul.f32 %v1327, %v1364
  %v1396 = vmul.f32 %v1328, %v1365
  %v1397 = vmul.f32 %v1329, %v1356
  %v1398 = vmul.f32 %v1330, %v1366
  %v1399 = vmul.f32 %v1331, %v1367
  %v1400 = vmul.f32 %v1332, %v1368
  %v1401 = vmul.f32 %v1333, %v1369
  %v1402 = vmul.f32 %v1334, %v1370
  %v1403 = vmul.f32 %v1335, %v1371
  %v1404 = vmul.f32 %v1336, %v1372
  %v1421 = vrot.slane %v1390, 7
  %vm1422 = vcmask 1041409
  %v1423 = vsel %vm1422, %v1421, %v1389
  %v1424 = vrot.slane %v1391, 6
  %vm1425 = vcmask 1042434
  %v1426 = vsel %vm1425, %v1424, %v1423
  %v1427 = vrot.slane %v1392, 5
  %vm1428 = vcmask 1043459
  %v1429 = vsel %vm1428, %v1427, %v1426
  %v1430 = vrot.slane %v1393, 4
  %vm1431 = vcmask 1044484
  %v1432 = vsel %vm1431, %v1430, %v1429
  %v1433 = vrot.slane %v1394, 3
  %vm1434 = vcmask 1045509
  %v1435 = vsel %vm1434, %v1433, %v1432
  %v1436 = vrot.slane %v1395, 2
  %vm1437 = vcmask 1046534
  %v1438 = vsel %vm1437, %v1436, %v1435
  %v1439 = vrot.slane %v1396, 1
  %vm1440 = vcmask 1047559
  %v1441 = vsel %vm1440, %v1439, %v1438
  %v1442 = vrot.slane %v1398, 7
  %v1443 = vsel %vm1422, %v1442, %v1397
  %v1444 = vrot.slane %v1399, 6
  %v1445 = vsel %vm1425, %v1444, %v1443
  %v1446 = vrot.slane %v1400, 5
  %v1447 = vsel %vm1428, %v1446, %v1445
  %v1448 = vrot.slane %v1401, 4
  %v1449 = vsel %vm1431, %v1448, %v1447
  %v1450 = vrot.slane %v1402, 3
  %v1451 = vsel %vm1434, %v1450, %v1449
  %v1452 = vrot.slane %v1403, 2
  %v1453 = vsel %vm1437, %v1452, %v1451
  %v1454 = vrot.slane %v1404, 1
  %v1455 = vsel %vm1440, %v1454, %v1453
  %v1458 = vadd.f32 %v1441, %v1455
  %v1459 = vrot.slane %v1458, 4
  %v1460 = vadd.f32 %v1458, %v1459
  %v1461 = vrot.slane %v1460, 2
  %v1462 = vadd.f32 %v1460, %v1461
  %v1463 = vrot.slane %v1462, 1
  %v1464 = vadd.f32 %v1462, %v1463
  %1465 = vst [vmem:[%s14] sm:$0x1] %v1464
  %v1466 = vadd.f32 %v49, %v53
  %v1467 = vadd.f32 %v1466, %v57
  %v1468 = vadd.f32 %v1467, %v61
  %v1469 = vadd.f32 %v1468, %v65
  %v1470 = vadd.f32 %v1469, %v69
  %v1471 = vadd.f32 %v1470, %v73
  %v1472 = vadd.f32 %v1471, %v77
  %v1473 = vadd.f32 %v1472, %v81
  %v1474 = vadd.f32 %v1473, %v85
  %v1475 = vadd.f32 %v1474, %v89
  %v1476 = vadd.f32 %v1475, %v93
  %v1477 = vadd.f32 %v1476, %v97
  %v1478 = vadd.f32 %v1477, %v101
  %v1479 = vadd.f32 %v1478, %v105
  %v1480 = vadd.f32 %v1479, %v109
  %v1481 = vadd.f32 %v50, %v54
  %v1482 = vadd.f32 %v1481, %v58
  %v1483 = vadd.f32 %v1482, %v62
  %v1484 = vadd.f32 %v1483, %v66
  %v1485 = vadd.f32 %v1484, %v70
  %v1486 = vadd.f32 %v1485, %v74
  %v1487 = vadd.f32 %v1486, %v78
  %v1488 = vadd.f32 %v1487, %v82
  %v1489 = vadd.f32 %v1488, %v86
  %v1490 = vadd.f32 %v1489, %v90
  %v1491 = vadd.f32 %v1490, %v94
  %v1492 = vadd.f32 %v1491, %v98
  %v1493 = vadd.f32 %v1492, %v102
  %v1494 = vadd.f32 %v1493, %v106
  %v1495 = vadd.f32 %v1494, %v110
  %v1496 = vadd.f32 %v51, %v55
  %v1497 = vadd.f32 %v1496, %v59
  %v1498 = vadd.f32 %v1497, %v63
  %v1499 = vadd.f32 %v1498, %v67
  %v1500 = vadd.f32 %v1499, %v71
  %v1501 = vadd.f32 %v1500, %v75
  %v1502 = vadd.f32 %v1501, %v79
  %v1503 = vadd.f32 %v1502, %v83
  %v1504 = vadd.f32 %v1503, %v87
  %v1505 = vadd.f32 %v1504, %v91
  %v1506 = vadd.f32 %v1505, %v95
  %v1507 = vadd.f32 %v1506, %v99
  %v1508 = vadd.f32 %v1507, %v103
  %v1509 = vadd.f32 %v1508, %v107
  %v1510 = vadd.f32 %v1509, %v111
  %v1511 = vadd.f32 %v52, %v56
  %v1512 = vadd.f32 %v1511, %v60
  %v1513 = vadd.f32 %v1512, %v64
  %v1514 = vadd.f32 %v1513, %v68
  %v1515 = vadd.f32 %v1514, %v72
  %v1516 = vadd.f32 %v1515, %v76
  %v1517 = vadd.f32 %v1516, %v80
  %v1518 = vadd.f32 %v1517, %v84
  %v1519 = vadd.f32 %v1518, %v88
  %v1520 = vadd.f32 %v1519, %v92
  %v1521 = vadd.f32 %v1520, %v96
  %v1522 = vadd.f32 %v1521, %v100
  %v1523 = vadd.f32 %v1522, %v104
  %v1524 = vadd.f32 %v1523, %v108
  %v1525 = vadd.f32 %v1524, %v112
  %v1526 = vadd.f32 %v113, %v117
  %v1527 = vadd.f32 %v1526, %v121
  %v1528 = vadd.f32 %v1527, %v125
  %v1529 = vadd.f32 %v1528, %v129
  %v1530 = vadd.f32 %v1529, %v133
  %v1531 = vadd.f32 %v1530, %v137
  %v1532 = vadd.f32 %v1531, %v141
  %v1533 = vadd.f32 %v1532, %v145
  %v1534 = vadd.f32 %v1533, %v149
  %v1535 = vadd.f32 %v1534, %v153
  %v1536 = vadd.f32 %v1535, %v157
  %v1537 = vadd.f32 %v1536, %v161
  %v1538 = vadd.f32 %v1537, %v165
  %v1539 = vadd.f32 %v1538, %v169
  %v1540 = vadd.f32 %v1539, %v173
  %v1541 = vadd.f32 %v114, %v118
  %v1542 = vadd.f32 %v1541, %v122
  %v1543 = vadd.f32 %v1542, %v126
  %v1544 = vadd.f32 %v1543, %v130
  %v1545 = vadd.f32 %v1544, %v134
  %v1546 = vadd.f32 %v1545, %v138
  %v1547 = vadd.f32 %v1546, %v142
  %v1548 = vadd.f32 %v1547, %v146
  %v1549 = vadd.f32 %v1548, %v150
  %v1550 = vadd.f32 %v1549, %v154
  %v1551 = vadd.f32 %v1550, %v158
  %v1552 = vadd.f32 %v1551, %v162
  %v1553 = vadd.f32 %v1552, %v166
  %v1554 = vadd.f32 %v1553, %v170
  %v1555 = vadd.f32 %v1554, %v174
  %v1556 = vadd.f32 %v115, %v119
  %v1557 = vadd.f32 %v1556, %v123
  %v1558 = vadd.f32 %v1557, %v127
  %v1559 = vadd.f32 %v1558, %v131
  %v1560 = vadd.f32 %v1559, %v135
  %v1561 = vadd.f32 %v1560, %v139
  %v1562 = vadd.f32 %v1561, %v143
  %v1563 = vadd.f32 %v1562, %v147
  %v1564 = vadd.f32 %v1563, %v151
  %v1565 = vadd.f32 %v1564, %v155
  %v1566 = vadd.f32 %v1565, %v159
  %v1567 = vadd.f32 %v1566, %v163
  %v1568 = vadd.f32 %v1567, %v167
  %v1569 = vadd.f32 %v1568, %v171
  %v1570 = vadd.f32 %v1569, %v175
  %v1571 = vadd.f32 %v116, %v120
  %v1572 = vadd.f32 %v1571, %v124
  %v1573 = vadd.f32 %v1572, %v128
  %v1574 = vadd.f32 %v1573, %v132
  %v1575 = vadd.f32 %v1574, %v136
  %v1576 = vadd.f32 %v1575, %v140
  %v1577 = vadd.f32 %v1576, %v144
  %v1578 = vadd.f32 %v1577, %v148
  %v1579 = vadd.f32 %v1578, %v152
  %v1580 = vadd.f32 %v1579, %v156
  %v1581 = vadd.f32 %v1580, %v160
  %v1582 = vadd.f32 %v1581, %v164
  %v1583 = vadd.f32 %v1582, %v168
  %v1584 = vadd.f32 %v1583, %v172
  %v1585 = vadd.f32 %v1584, %v176
  %v1586 = vld [vmem:[%s11] sm:$0xff]
  %v1587 = vld [vmem:[%s11 + $0x8] sm:$0xff]
  %v1588 = vld [vmem:[%s11 + $0x10] sm:$0xff]
  %v1589 = vld [vmem:[%s11 + $0x18] sm:$0xff]
  %v1590 = vld [vmem:[%s11 + $0x20] sm:$0xff]
  %v1591 = vld [vmem:[%s11 + $0x28] sm:$0xff]
  %v1592 = vld [vmem:[%s11 + $0x30] sm:$0xff]
  %v1593 = vld [vmem:[%s11 + $0x38] sm:$0xff]
  %v1594 = vld [vmem:[%s11 + $0x40] sm:$0xff]
  %v1595 = vld [vmem:[%s11 + $0x48] sm:$0xff]
  %v1596 = vld [vmem:[%s11 + $0x50] sm:$0xff]
  %v1597 = vld [vmem:[%s11 + $0x58] sm:$0xff]
  %v1598 = vld [vmem:[%s11 + $0x60] sm:$0xff]
  %v1599 = vld [vmem:[%s11 + $0x68] sm:$0xff]
  %v1600 = vld [vmem:[%s11 + $0x70] sm:$0xff]
  %v1601 = vld [vmem:[%s11 + $0x78] sm:$0xff]
  %v1602 = vld [vmem:[%s12] sm:$0xff]
  %v1603 = vld [vmem:[%s12 + $0x8] sm:$0xff]
  %v1604 = vld [vmem:[%s12 + $0x10] sm:$0xff]
  %v1605 = vld [vmem:[%s12 + $0x18] sm:$0xff]
  %v1606 = vld [vmem:[%s12 + $0x20] sm:$0xff]
  %v1607 = vld [vmem:[%s12 + $0x28] sm:$0xff]
  %v1608 = vld [vmem:[%s12 + $0x30] sm:$0xff]
  %v1609 = vld [vmem:[%s12 + $0x38] sm:$0xff]
  %v1610 = vld [vmem:[%s12 + $0x40] sm:$0xff]
  %v1611 = vld [vmem:[%s12 + $0x48] sm:$0xff]
  %v1612 = vld [vmem:[%s12 + $0x50] sm:$0xff]
  %v1613 = vld [vmem:[%s12 + $0x58] sm:$0xff]
  %v1614 = vld [vmem:[%s12 + $0x60] sm:$0xff]
  %v1615 = vld [vmem:[%s12 + $0x68] sm:$0xff]
  %v1616 = vld [vmem:[%s12 + $0x70] sm:$0xff]
  %v1617 = vld [vmem:[%s12 + $0x78] sm:$0xff]
  %vm1618 = vcmask 261120
  %v1620 = vsel %vm1618, %v1602, 0
  %v1623 = vsel %vm1618, %v1603, 0
  %v1626 = vsel %vm1618, %v1604, 0
  %v1629 = vsel %vm1618, %v1605, 0
  %v1632 = vsel %vm1618, %v1606, 0
  %v1635 = vsel %vm1618, %v1607, 0
  %v1638 = vsel %vm1618, %v1608, 0
  %v1641 = vsel %vm1618, %v1609, 0
  %v1644 = vsel %vm1618, %v1610, 0
  %v1647 = vsel %vm1618, %v1611, 0
  %v1650 = vsel %vm1618, %v1612, 0
  %v1653 = vsel %vm1618, %v1613, 0
  %v1656 = vsel %vm1618, %v1614, 0
  %v1659 = vsel %vm1618, %v1615, 0
  %v1662 = vsel %vm1618, %v1616, 0
  %v1665 = vsel %vm1618, %v1617, 0
  %1667 = vmatpush.msra.mxu0 0.0
  %1668 = vmatpush.msra.mxu0 0.0
  %1669 = vmatpush.msra.mxu0 0.0
  %1670 = vmatpush.msra.mxu0 0.0
  %1671 = vmatpush.msra.mxu0 0.0
  %1672 = vmatpush.msra.mxu0 0.0
  %1673 = vmatpush.msra.mxu0 0.0
  %1674 = vmatpush.msra.mxu0 0.0
  %1675 = vmatpush.msra.mxu0 0.0
  %1676 = vmatpush.msra.mxu0 0.0
  %1677 = vmatpush.msra.mxu0 0.0
  %1678 = vmatpush.msra.mxu0 0.0
  %1679 = vmatpush.msra.mxu0 %v1585
  %1680 = vmatpush.msra.mxu0 %v1570
  %1681 = vmatpush.msra.mxu0 %v1555
  %1682 = vmatpush.msra.mxu0 %v1540
  %1683 = vmatmul.f32.gmra.mxu0 %v1620
  %v1684 = vpop.f32.mrf.mxu0
  %v1685 = vadd.f32 0.0, %v1684
  %1686 = vmatmul.f32.gmra.mxu0 %v1623
  %v1687 = vpop.f32.mrf.mxu0
  %v1688 = vadd.f32 0.0, %v1687
  %1689 = vmatmul.f32.gmra.mxu0 %v1626
  %v1690 = vpop.f32.mrf.mxu0
  %v1691 = vadd.f32 0.0, %v1690
  %1692 = vmatmul.f32.gmra.mxu0 %v1629
  %v1693 = vpop.f32.mrf.mxu0
  %v1694 = vadd.f32 0.0, %v1693
  %1695 = vmatmul.f32.gmra.mxu0 %v1632
  %v1696 = vpop.f32.mrf.mxu0
  %v1697 = vadd.f32 0.0, %v1696
  %1698 = vmatmul.f32.gmra.mxu0 %v1635
  %v1699 = vpop.f32.mrf.mxu0
  %v1700 = vadd.f32 0.0, %v1699
  %1701 = vmatmul.f32.gmra.mxu0 %v1638
  %v1702 = vpop.f32.mrf.mxu0
  %v1703 = vadd.f32 0.0, %v1702
  %1704 = vmatmul.f32.gmra.mxu0 %v1641
  %v1705 = vpop.f32.mrf.mxu0
  %v1706 = vadd.f32 0.0, %v1705
  %1707 = vmatmul.f32.gmra.mxu0 %v1644
  %v1708 = vpop.f32.mrf.mxu0
  %v1709 = vadd.f32 0.0, %v1708
  %1710 = vmatmul.f32.gmra.mxu0 %v1647
  %v1711 = vpop.f32.mrf.mxu0
  %v1712 = vadd.f32 0.0, %v1711
  %1713 = vmatmul.f32.gmra.mxu0 %v1650
  %v1714 = vpop.f32.mrf.mxu0
  %v1715 = vadd.f32 0.0, %v1714
  %1716 = vmatmul.f32.gmra.mxu0 %v1653
  %v1717 = vpop.f32.mrf.mxu0
  %v1718 = vadd.f32 0.0, %v1717
  %1719 = vmatmul.f32.gmra.mxu0 %v1656
  %v1720 = vpop.f32.mrf.mxu0
  %v1721 = vadd.f32 0.0, %v1720
  %1722 = vmatmul.f32.gmra.mxu0 %v1659
  %v1723 = vpop.f32.mrf.mxu0
  %v1724 = vadd.f32 0.0, %v1723
  %1725 = vmatmul.f32.gmra.mxu0 %v1662
  %v1726 = vpop.f32.mrf.mxu0
  %v1727 = vadd.f32 0.0, %v1726
  %1728 = vmatmul.f32.gmra.mxu0 %v1665
  %v1729 = vpop.f32.mrf.mxu0
  %v1730 = vadd.f32 0.0, %v1729
  %1731 = vdwg.mxu0
  %v1733 = vsel %vm1618, %v1586, 0
  %v1736 = vsel %vm1618, %v1587, 0
  %v1739 = vsel %vm1618, %v1588, 0
  %v1742 = vsel %vm1618, %v1589, 0
  %v1745 = vsel %vm1618, %v1590, 0
  %v1748 = vsel %vm1618, %v1591, 0
  %v1751 = vsel %vm1618, %v1592, 0
  %v1754 = vsel %vm1618, %v1593, 0
  %v1757 = vsel %vm1618, %v1594, 0
  %v1760 = vsel %vm1618, %v1595, 0
  %v1763 = vsel %vm1618, %v1596, 0
  %v1766 = vsel %vm1618, %v1597, 0
  %v1769 = vsel %vm1618, %v1598, 0
  %v1772 = vsel %vm1618, %v1599, 0
  %v1775 = vsel %vm1618, %v1600, 0
  %v1778 = vsel %vm1618, %v1601, 0
  %1780 = vmatpush.msra.mxu0 0.0
  %1781 = vmatpush.msra.mxu0 0.0
  %1782 = vmatpush.msra.mxu0 0.0
  %1783 = vmatpush.msra.mxu0 0.0
  %1784 = vmatpush.msra.mxu0 0.0
  %1785 = vmatpush.msra.mxu0 0.0
  %1786 = vmatpush.msra.mxu0 0.0
  %1787 = vmatpush.msra.mxu0 0.0
  %1788 = vmatpush.msra.mxu0 0.0
  %1789 = vmatpush.msra.mxu0 0.0
  %1790 = vmatpush.msra.mxu0 0.0
  %1791 = vmatpush.msra.mxu0 0.0
  %1792 = vmatpush.msra.mxu0 %v1525
  %1793 = vmatpush.msra.mxu0 %v1510
  %1794 = vmatpush.msra.mxu0 %v1495
  %1795 = vmatpush.msra.mxu0 %v1480
  %1796 = vmatmul.f32.gmra.mxu0 %v1733
  %v1797 = vpop.f32.mrf.mxu0
  %v1798 = vadd.f32 %v1685, %v1797
  %1799 = vmatmul.f32.gmra.mxu0 %v1736
  %v1800 = vpop.f32.mrf.mxu0
  %v1801 = vadd.f32 %v1688, %v1800
  %1802 = vmatmul.f32.gmra.mxu0 %v1739
  %v1803 = vpop.f32.mrf.mxu0
  %v1804 = vadd.f32 %v1691, %v1803
  %1805 = vmatmul.f32.gmra.mxu0 %v1742
  %v1806 = vpop.f32.mrf.mxu0
  %v1807 = vadd.f32 %v1694, %v1806
  %1808 = vmatmul.f32.gmra.mxu0 %v1745
  %v1809 = vpop.f32.mrf.mxu0
  %v1810 = vadd.f32 %v1697, %v1809
  %1811 = vmatmul.f32.gmra.mxu0 %v1748
  %v1812 = vpop.f32.mrf.mxu0
  %v1813 = vadd.f32 %v1700, %v1812
  %1814 = vmatmul.f32.gmra.mxu0 %v1751
  %v1815 = vpop.f32.mrf.mxu0
  %v1816 = vadd.f32 %v1703, %v1815
  %1817 = vmatmul.f32.gmra.mxu0 %v1754
  %v1818 = vpop.f32.mrf.mxu0
  %v1819 = vadd.f32 %v1706, %v1818
  %1820 = vmatmul.f32.gmra.mxu0 %v1757
  %v1821 = vpop.f32.mrf.mxu0
  %v1822 = vadd.f32 %v1709, %v1821
  %1823 = vmatmul.f32.gmra.mxu0 %v1760
  %v1824 = vpop.f32.mrf.mxu0
  %v1825 = vadd.f32 %v1712, %v1824
  %1826 = vmatmul.f32.gmra.mxu0 %v1763
  %v1827 = vpop.f32.mrf.mxu0
  %v1828 = vadd.f32 %v1715, %v1827
  %1829 = vmatmul.f32.gmra.mxu0 %v1766
  %v1830 = vpop.f32.mrf.mxu0
  %v1831 = vadd.f32 %v1718, %v1830
  %1832 = vmatmul.f32.gmra.mxu0 %v1769
  %v1833 = vpop.f32.mrf.mxu0
  %v1834 = vadd.f32 %v1721, %v1833
  %1835 = vmatmul.f32.gmra.mxu0 %v1772
  %v1836 = vpop.f32.mrf.mxu0
  %v1837 = vadd.f32 %v1724, %v1836
  %1838 = vmatmul.f32.gmra.mxu0 %v1775
  %v1839 = vpop.f32.mrf.mxu0
  %v1840 = vadd.f32 %v1727, %v1839
  %1841 = vmatmul.f32.gmra.mxu0 %v1778
  %v1842 = vpop.f32.mrf.mxu0
  %v1843 = vadd.f32 %v1730, %v1842
  %1844 = vdwg.mxu0
  %v1845 = vld [vmem:[%s13] sm:$0xff]
  %v1846 = vld [vmem:[%s13 + $0x8] sm:$0xff]
  %v1847 = vld [vmem:[%s13 + $0x10] sm:$0xff]
  %v1848 = vld [vmem:[%s13 + $0x18] sm:$0xff]
  %v1849 = vld [vmem:[%s13 + $0x20] sm:$0xff]
  %v1850 = vld [vmem:[%s13 + $0x28] sm:$0xff]
  %v1851 = vld [vmem:[%s13 + $0x30] sm:$0xff]
  %v1852 = vld [vmem:[%s13 + $0x38] sm:$0xff]
  %v1853 = vld [vmem:[%s13 + $0x40] sm:$0xff]
  %v1854 = vld [vmem:[%s13 + $0x48] sm:$0xff]
  %v1855 = vld [vmem:[%s13 + $0x50] sm:$0xff]
  %v1856 = vld [vmem:[%s13 + $0x58] sm:$0xff]
  %v1857 = vld [vmem:[%s13 + $0x60] sm:$0xff]
  %v1858 = vld [vmem:[%s13 + $0x68] sm:$0xff]
  %v1859 = vld [vmem:[%s13 + $0x70] sm:$0xff]
  %v1860 = vld [vmem:[%s13 + $0x78] sm:$0xff]
  %1862 = vset.pattern.permute.xlu0 0
  %1863 = vperm.xlu0 %1862, %v1845
  %v1864 = vpop.permute.xlu0 %1863
  %1867 = vset.pattern.permute.xlu0 0
  %1868 = vperm.xlu0 %1867, %v1846
  %v1869 = vpop.permute.xlu0 %1868
  %1872 = vset.pattern.permute.xlu0 0
  %1873 = vperm.xlu0 %1872, %v1847
  %v1874 = vpop.permute.xlu0 %1873
  %1877 = vset.pattern.permute.xlu0 0
  %1878 = vperm.xlu0 %1877, %v1848
  %v1879 = vpop.permute.xlu0 %1878
  %1882 = vset.pattern.permute.xlu0 0
  %1883 = vperm.xlu0 %1882, %v1849
  %v1884 = vpop.permute.xlu0 %1883
  %1887 = vset.pattern.permute.xlu0 0
  %1888 = vperm.xlu0 %1887, %v1850
  %v1889 = vpop.permute.xlu0 %1888
  %1892 = vset.pattern.permute.xlu0 0
  %1893 = vperm.xlu0 %1892, %v1851
  %v1894 = vpop.permute.xlu0 %1893
  %1897 = vset.pattern.permute.xlu0 0
  %1898 = vperm.xlu0 %1897, %v1852
  %v1899 = vpop.permute.xlu0 %1898
  %1902 = vset.pattern.permute.xlu0 0
  %1903 = vperm.xlu0 %1902, %v1853
  %v1904 = vpop.permute.xlu0 %1903
  %1907 = vset.pattern.permute.xlu0 0
  %1908 = vperm.xlu0 %1907, %v1854
  %v1909 = vpop.permute.xlu0 %1908
  %1912 = vset.pattern.permute.xlu0 0
  %1913 = vperm.xlu0 %1912, %v1855
  %v1914 = vpop.permute.xlu0 %1913
  %1917 = vset.pattern.permute.xlu0 0
  %1918 = vperm.xlu0 %1917, %v1856
  %v1919 = vpop.permute.xlu0 %1918
  %1922 = vset.pattern.permute.xlu0 0
  %1923 = vperm.xlu0 %1922, %v1857
  %v1924 = vpop.permute.xlu0 %1923
  %1927 = vset.pattern.permute.xlu0 0
  %1928 = vperm.xlu0 %1927, %v1858
  %v1929 = vpop.permute.xlu0 %1928
  %1932 = vset.pattern.permute.xlu0 0
  %1933 = vperm.xlu0 %1932, %v1859
  %v1934 = vpop.permute.xlu0 %1933
  %1937 = vset.pattern.permute.xlu0 0
  %1938 = vperm.xlu0 %1937, %v1860
  %v1939 = vpop.permute.xlu0 %1938
  %v1941 = vadd.f32 %v1798, %v1864
  %v1942 = vadd.f32 %v1801, %v1869
  %v1943 = vadd.f32 %v1804, %v1874
  %v1944 = vadd.f32 %v1807, %v1879
  %v1945 = vadd.f32 %v1810, %v1884
  %v1946 = vadd.f32 %v1813, %v1889
  %v1947 = vadd.f32 %v1816, %v1894
  %v1948 = vadd.f32 %v1819, %v1899
  %v1949 = vadd.f32 %v1822, %v1904
  %v1950 = vadd.f32 %v1825, %v1909
  %v1951 = vadd.f32 %v1828, %v1914
  %v1952 = vadd.f32 %v1831, %v1919
  %v1953 = vadd.f32 %v1834, %v1924
  %v1954 = vadd.f32 %v1837, %v1929
  %v1955 = vadd.f32 %v1840, %v1934
  %v1956 = vadd.f32 %v1843, %v1939
  %1957 = vst [vmem:[%s15] sm:$0xff] %v1941
  %1958 = vst [vmem:[%s15 + $0x8] sm:$0xff] %v1942
  %1959 = vst [vmem:[%s15 + $0x10] sm:$0xff] %v1943
  %1960 = vst [vmem:[%s15 + $0x18] sm:$0xff] %v1944
  %1961 = vst [vmem:[%s15 + $0x20] sm:$0xff] %v1945
  %1962 = vst [vmem:[%s15 + $0x28] sm:$0xff] %v1946
  %1963 = vst [vmem:[%s15 + $0x30] sm:$0xff] %v1947
  %1964 = vst [vmem:[%s15 + $0x38] sm:$0xff] %v1948
  %1965 = vst [vmem:[%s15 + $0x40] sm:$0xff] %v1949
  %1966 = vst [vmem:[%s15 + $0x48] sm:$0xff] %v1950
  %1967 = vst [vmem:[%s15 + $0x50] sm:$0xff] %v1951
  %1968 = vst [vmem:[%s15 + $0x58] sm:$0xff] %v1952
  %1969 = vst [vmem:[%s15 + $0x60] sm:$0xff] %v1953
  %1970 = vst [vmem:[%s15 + $0x68] sm:$0xff] %v1954
  %1971 = vst [vmem:[%s15 + $0x70] sm:$0xff] %v1955
  %1972 = vst [vmem:[%s15 + $0x78] sm:$0xff] %v1956
  // Predicated region
  $region58: #{two_tag_sulm_predict.1} parent=0 // pred_check
    _
  $region59: #{two_tag_sulm_predict.1} parent=0 // pred_check_branch
    %1974 = sbr.rel (0) target = $region61
  $region60: #{two_tag_sulm_predict.1} parent=0 // pred_region
    _
  $region61: #{two_tag_sulm_predict.1} parent=0 // pred_fallthru
    _
  // Predicated region
  $region62: #{two_tag_sulm_predict.1} parent=0 // pred_check
    _
  $region63: #{two_tag_sulm_predict.1} parent=0 // pred_check_branch
    %1976 = sbr.rel (0) target = $region65
  $region64: #{two_tag_sulm_predict.1} parent=0 // pred_region
    _
  $region65: #{two_tag_sulm_predict.1} parent=0 // pred_fallthru
    _
  // Predicated region
  $region66: #{two_tag_sulm_predict.1} parent=0 // pred_check
    _
  $region67: #{two_tag_sulm_predict.1} parent=0 // pred_check_branch
    %1978 = sbr.rel (0) target = $region69
  $region68: #{two_tag_sulm_predict.1} parent=0 // pred_region
    _
  $region69: #{two_tag_sulm_predict.1} parent=0 // pred_fallthru
    _
  // Predicated region
  $region70: #{two_tag_sulm_predict.1} parent=0 // pred_check
    _
  $region71: #{two_tag_sulm_predict.1} parent=0 // pred_check_branch
    %1980 = sbr.rel (0) target = $region73
  $region72: #{two_tag_sulm_predict.1} parent=0 // pred_region
    _
  $region73: #{two_tag_sulm_predict.1} parent=0 // pred_fallthru
    _

</llo_original>
